<compile_context>
chip_gen: v5e
topology: v5e:2x2
jax: 0.10.0
libtpu: 0.0.40
codegen_flags: <defaults>
</compile_context>

<pallas_src>
import functools

import jax
import jax.numpy as jnp
from jax.experimental import pallas as pl
from jax.experimental.pallas import tpu as pltpu


def lstm_kernel(x_ref, wih_ref, bias_ref, whh_ref, wlin_ref, blin_ref,
                out_ref, h_ref, c_ref, *, seq_len, apply_mask):
    """One (batch_tile, time_block) grid step of the LSTM recurrence.

    x_ref:    (1, BT, TB)  raw inputs, batch in sublanes / time in lanes
    wih_ref:  (1, 4*Hp)    input->gate weights (input_size==1), per-gate lane padded
    bias_ref: (1, 4*Hp)    b_ih + b_hh, per-gate lane padded
    whh_ref:  (Hp, 4*Hp)   hidden->gate weights (transposed, per-gate lane padded),
                           dtype = mxu_dtype (bf16 => single-pass MXU)
    wlin_ref: (Hp, 128)    final linear weight (real column at lane 0)
    blin_ref: (1, 128)     final linear bias   (real value at lane 0)
    out_ref:  (BT, 128)    output block (column 0 is the model output)
    h_ref/c_ref: (BT, Hp)  f32 state, persists across time blocks
    """
    t_idx = pl.program_id(1)
    Hp = whh_ref.shape[0]
    TB = x_ref.shape[2]

    @pl.when(t_idx == 0)
    def _():
        h_ref[...] = jnp.zeros_like(h_ref)
        c_ref[...] = jnp.zeros_like(c_ref)

    xb = x_ref[0]                # (BT, TB)
    w_row = wih_ref[...]         # (1, 4*Hp)
    bias = bias_ref[...]         # (1, 4*Hp)
    whh = whh_ref[...]           # (Hp, 4*Hp), weight-stationary in VMEM

    # State lives in vregs inside the block; written back to scratch once per block.
    h = h_ref[...]
    c = c_ref[...]

    # Bounded unroll: TB <= 32 steps; the grid's time axis is the rolled loop.
    for u in range(TB):
        # Input projection on the fly (off the serial h-chain): (BT,1)*(1,4Hp) + bias.
        gin = xb[:, u:u + 1] * w_row + bias
        # Serial critical path: single-pass MXU matmul (operand dtype pins precision),
        # f32 accumulation.
        gates = gin + jnp.dot(h.astype(whh.dtype), whh,
                              preferred_element_type=jnp.float32)
        # 128-lane aligned gate slices (i | f | g | o) -> no cross-lane relayout.
        i_g = jax.nn.sigmoid(gates[:, 0 * Hp:1 * Hp])
        f_g = jax.nn.sigmoid(gates[:, 1 * Hp:2 * Hp])
        g_g = jnp.tanh(gates[:, 2 * Hp:3 * Hp])
        o_g = jax.nn.sigmoid(gates[:, 3 * Hp:4 * Hp])
        c_new = f_g * c + i_g * g_g
        h_new = o_g * jnp.tanh(c_new)
        if apply_mask:
            # Only the last time block can contain padded steps; cheap VPU select.
            valid = (t_idx * TB + u) < seq_len
            h = jnp.where(valid, h_new, h)
            c = jnp.where(valid, c_new, c)
        else:
            h, c = h_new, c_new

    h_ref[...] = h
    c_ref[...] = c

    @pl.when(t_idx == pl.num_programs(1) - 1)
    def _():
        out_ref[...] = (jnp.dot(h, wlin_ref[...],
                                preferred_element_type=jnp.float32)
                        + blin_ref[...])


def lstm_model_forward(x, params, *, mxu_dtype=jnp.bfloat16, t_block=32,
                       batch_block=64):
    """x: (B, T) float32 -> (B, 1) float32 (same semantics as LSTMModel.forward)."""
    w_ih, w_hh, b_ih, b_hh, w_lin, b_lin = params
    B, T = x.shape
    H = w_hh.shape[1]
    Hp = 128                     # lane-aligned per-gate width
    G = 4 * Hp

    # --- batch tiling: sublane-aligned, per-core tile capped at 64 rows --------------
    Bp = max(8, ((B + 7) // 8) * 8)
    if Bp > batch_block:
        BT = batch_block
        Bp = ((Bp + BT - 1) // BT) * BT
    else:
        BT = Bp
    nb = Bp // BT

    # --- time blocking: TB = bounded unroll, grid supplies the rolled loop -----------
    TB = min(T, t_block)
    nt = (T + TB - 1) // TB
    Tpad = nt * TB

    # --- glue (plain JAX, tiny: only raw x + small weights touch HBM) ----------------
    xp = jnp.zeros((Bp, Tpad), jnp.float32).at[:B, :T].set(x.astype(jnp.float32))
    x3 = xp.reshape(Bp, nt, TB).transpose(1, 0, 2)          # (nt, Bp, TB)

    # input_size == 1: per-gate lane-padded row of w_ih and combined bias.
    wih_row = jnp.pad(w_ih[:, 0].reshape(4, H).astype(jnp.float32),
                      ((0, 0), (0, Hp - H))).reshape(1, G)
    bias = jnp.pad((b_ih + b_hh).reshape(4, H).astype(jnp.float32),
                   ((0, 0), (0, Hp - H))).reshape(1, G)

    # Hidden->gate weights: (4H, H) -> (H_in, 4, H_out) -> zero pad -> (Hp, 4*Hp).
    # Zero padding + zero initial state keep padded hidden lanes exactly 0.
    whh = w_hh.reshape(4, H, H).transpose(2, 0, 1).astype(jnp.float32)
    whh = jnp.pad(whh, ((0, Hp - H), (0, 0), (0, Hp - H))).reshape(Hp, G)
    whh = whh.astype(mxu_dtype)        # pins the MXU pass count (bf16 = single pass)

    # Final linear, lane-dense output: real weight/bias in column 0.
    wlin = jnp.zeros((Hp, 128), jnp.float32).at[:H, 0].set(w_lin[0, :])
    blin = jnp.zeros((1, 128), jnp.float32).at[0, 0].set(b_lin[0])

    kernel = functools.partial(lstm_kernel, seq_len=T, apply_mask=(Tpad != T))

    out = pl.pallas_call(
        kernel,
        out_shape=jax.ShapeDtypeStruct((Bp, 128), jnp.float32),
        grid=(nb, nt),
        in_specs=[
            pl.BlockSpec((1, BT, TB), lambda b, t: (t, b, 0)),   # x, streamed
            pl.BlockSpec((1, G), lambda b, t: (0, 0)),           # w_ih row (stationary)
            pl.BlockSpec((1, G), lambda b, t: (0, 0)),           # bias     (stationary)
            pl.BlockSpec((Hp, G), lambda b, t: (0, 0)),          # whh      (stationary)
            pl.BlockSpec((Hp, 128), lambda b, t: (0, 0)),        # wlin     (stationary)
            pl.BlockSpec((1, 128), lambda b, t: (0, 0)),         # blin     (stationary)
        ],
        out_specs=pl.BlockSpec((BT, 128), lambda b, t: (b, 0)),
        scratch_shapes=[pltpu.VMEM((BT, Hp), jnp.float32),       # h
                        pltpu.VMEM((BT, Hp), jnp.float32)],      # c
        compiler_params=pltpu.CompilerParams(
            dimension_semantics=("parallel", "arbitrary"),
            # Footprint is < 2 MiB; 32 MiB is safely under v7x's 64 MiB physical VMEM.
            vmem_limit_bytes=32 * 1024 * 1024),
    )(x3, wih_row, bias, whh, wlin, blin)
    return out[:B, 0:1]


def lstm_model_reference(x, params):
    """Pure-JAX f32 reference matching PyTorch nn.LSTM (gate order i, f, g, o)."""
    w_ih, w_hh, b_ih, b_hh, w_lin, b_lin = params
    B, T = x.shape
    H = w_hh.shape[1]
    h = jnp.zeros((B, H), jnp.float32)
    c = jnp.zeros((B, H), jnp.float32)
    for t in range(T):
        xt = x[:, t:t + 1]
        gates = xt @ w_ih.T + h @ w_hh.T + b_ih + b_hh
        i_g = jax.nn.sigmoid(gates[:, 0 * H:1 * H])
        f_g = jax.nn.sigmoid(gates[:, 1 * H:2 * H])
        g_g = jnp.tanh(gates[:, 2 * H:3 * H])
        o_g = jax.nn.sigmoid(gates[:, 3 * H:4 * H])
        c = f_g * c + i_g * g_g
        h = o_g * jnp.tanh(c)
    return h @ w_lin.T + b_lin


def init_params(key, input_size=1, hidden_size=64):
    """Deterministic init mirroring PyTorch's U(-1/sqrt(H), 1/sqrt(H))."""
    H = hidden_size
    k = 1.0 / jnp.sqrt(jnp.float32(H))
    ks = jax.random.split(key, 6)
    w_ih = jax.random.uniform(ks[0], (4 * H, input_size), jnp.float32, -k, k)
    w_hh = jax.random.uniform(ks[1], (4 * H, H), jnp.float32, -k, k)
    b_ih = jax.random.uniform(ks[2], (4 * H,), jnp.float32, -k, k)
    b_hh = jax.random.uniform(ks[3], (4 * H,), jnp.float32, -k, k)
    w_lin = jax.random.uniform(ks[4], (1, H), jnp.float32, -k, k)
    b_lin = jax.random.uniform(ks[5], (1,), jnp.float32, -k, k)
    return (w_ih, w_hh, b_ih, b_hh, w_lin, b_lin)


if __name__ == "__main__":
    B, T, H = 2, 8, 64
    key = jax.random.PRNGKey(0)
    k_x, k_p, k_x2 = jax.random.split(key, 3)
    x = jax.random.normal(k_x, (B, T), jnp.float32)   # forward() unsqueezes to (B, T, 1)
    params = init_params(k_p, input_size=1, hidden_size=H)
    ref_fn = jax.jit(lstm_model_reference)

    # Bit-faithful path (f32 multi-pass MXU), tight tolerance vs pure-f32 reference.
    out_f32 = jax.block_until_ready(lstm_model_forward(x, params, mxu_dtype=jnp.float32))
    ref = ref_fn(x, params)
    assert out_f32.shape == (B, 1)
    assert jnp.allclose(out_f32, ref, atol=2e-5, rtol=2e-5), (out_f32, ref)

    # Default fast path: pinned single-pass bf16 MXU on the serial h-chain.
    out_bf16 = jax.block_until_ready(lstm_model_forward(x, params))
    assert jnp.allclose(out_bf16, ref, atol=2e-2, rtol=2e-2), (out_bf16, ref)

    # Longer sequence: exercises the streamed time grid (nt > 1) and tail masking.
    T2 = 100
    x2 = jax.random.normal(k_x2, (B, T2), jnp.float32)
    out2 = jax.block_until_ready(lstm_model_forward(x2, params, mxu_dtype=jnp.float32))
    ref2 = ref_fn(x2, params)
    assert jnp.allclose(out2, ref2, atol=1e-4, rtol=1e-4), (out2, ref2)

    print("KERNEL_OK")
</pallas_src>

<mosaic_0001>
module attributes {stable_mosaic.version = 11 : i64} {
  func.func @lstm_kernel(%arg0: i32, %arg1: i32, %arg2: memref<1x8x8xf32, #tpu.memory_space<vmem>>, %arg3: memref<1x512xf32, #tpu.memory_space<vmem>>, %arg4: memref<1x512xf32, #tpu.memory_space<vmem>>, %arg5: memref<128x512xf32, #tpu.memory_space<vmem>>, %arg6: memref<128x128xf32, #tpu.memory_space<vmem>>, %arg7: memref<1x128xf32, #tpu.memory_space<vmem>>, %arg8: memref<8x128xf32, #tpu.memory_space<vmem>>, %arg9: memref<8x128xf32, #tpu.memory_space<vmem>>, %arg10: memref<8x128xf32, #tpu.memory_space<vmem>>) attributes {dimension_semantics = [#tpu.dimension_semantics<parallel>, #tpu.dimension_semantics<arbitrary>], iteration_bounds = array<i64: 1, 1>, scalar_prefetch = 0 : i64, scratch_operands = 2 : i64, tpu.core_type = #tpu.core_type<tc>, window_params = [{transform_indices = @transform_0, window_bounds = array<i64: 1, 8, 8>}, {pipeline_mode = #tpu.pipeline_mode<synchronous>, transform_indices = @transform_1, window_bounds = array<i64: 1, 512>}, {pipeline_mode = #tpu.pipeline_mode<synchronous>, transform_indices = @transform_2, window_bounds = array<i64: 1, 512>}, {pipeline_mode = #tpu.pipeline_mode<synchronous>, transform_indices = @transform_3, window_bounds = array<i64: 128, 512>}, {pipeline_mode = #tpu.pipeline_mode<synchronous>, transform_indices = @transform_4, window_bounds = array<i64: 128, 128>}, {pipeline_mode = #tpu.pipeline_mode<synchronous>, transform_indices = @transform_5, window_bounds = array<i64: 1, 128>}, {transform_indices = @transform_6, window_bounds = array<i64: 8, 128>}]} {
    %c0_i32 = arith.constant 0 : i32
    %0 = arith.cmpi eq, %arg1, %c0_i32 : i32
    %1 = arith.extui %0 : i1 to i32
    %c0_i32_0 = arith.constant 0 : i32
    %2 = arith.cmpi ne, %1, %c0_i32_0 : i32
    scf.if %2 {
      %cst_50 = arith.constant 0.000000e+00 : f32
      %279 = vector.broadcast %cst_50 : f32 to vector<8x128xf32>
      %c0_51 = arith.constant 0 : index
      %c0_52 = arith.constant 0 : index
      %280 = vector.load %arg9[%c0_51, %c0_52] : memref<8x128xf32, #tpu.memory_space<vmem>>, vector<8x128xf32>
      tpu.vector_store %arg9[%c0_51, %c0_52], %279 {strides = array<i32>} : memref<8x128xf32, #tpu.memory_space<vmem>>, vector<8x128xf32>,
      %cst_53 = arith.constant 0.000000e+00 : f32
      %281 = vector.broadcast %cst_53 : f32 to vector<8x128xf32>
      %c0_54 = arith.constant 0 : index
      %c0_55 = arith.constant 0 : index
      %282 = vector.load %arg10[%c0_54, %c0_55] : memref<8x128xf32, #tpu.memory_space<vmem>>, vector<8x128xf32>
      tpu.vector_store %arg10[%c0_54, %c0_55], %281 {strides = array<i32>} : memref<8x128xf32, #tpu.memory_space<vmem>>, vector<8x128xf32>,
    } else {
    }
    %c0 = arith.constant 0 : index
    %c0_1 = arith.constant 0 : index
    %c0_2 = arith.constant 0 : index
    %3 = vector.load %arg2[%c0, %c0_1, %c0_2] : memref<1x8x8xf32, #tpu.memory_space<vmem>>, vector<1x8x8xf32>
    %4 = vector.shape_cast %3 : vector<1x8x8xf32> to vector<8x8xf32>
    %c0_3 = arith.constant 0 : index
    %c0_4 = arith.constant 0 : index
    %5 = vector.load %arg3[%c0_3, %c0_4] : memref<1x512xf32, #tpu.memory_space<vmem>>, vector<1x512xf32>
    %c0_5 = arith.constant 0 : index
    %c0_6 = arith.constant 0 : index
    %6 = vector.load %arg4[%c0_5, %c0_6] : memref<1x512xf32, #tpu.memory_space<vmem>>, vector<1x512xf32>
    %c0_7 = arith.constant 0 : index
    %c0_8 = arith.constant 0 : index
    %7 = vector.load %arg5[%c0_7, %c0_8] : memref<128x512xf32, #tpu.memory_space<vmem>>, vector<128x512xf32>
    %c0_9 = arith.constant 0 : index
    %c0_10 = arith.constant 0 : index
    %8 = vector.load %arg9[%c0_9, %c0_10] : memref<8x128xf32, #tpu.memory_space<vmem>>, vector<8x128xf32>
    %c0_11 = arith.constant 0 : index
    %c0_12 = arith.constant 0 : index
    %9 = vector.load %arg10[%c0_11, %c0_12] : memref<8x128xf32, #tpu.memory_space<vmem>>, vector<8x128xf32>
    %10 = vector.extract_strided_slice %4 {offsets = [0, 0], sizes = [8, 1], strides = [1, 1]} : vector<8x8xf32> to vector<8x1xf32>
    %11 = vector.broadcast %10 : vector<8x1xf32> to vector<8x512xf32>
    %12 = vector.broadcast %5 : vector<1x512xf32> to vector<8x512xf32>
    %13 = arith.mulf %11, %12 : vector<8x512xf32>
    %14 = vector.broadcast %6 : vector<1x512xf32> to vector<8x512xf32>
    %15 = arith.addf %13, %14 : vector<8x512xf32>
    %cst = arith.constant dense<0.000000e+00> : vector<8x512xf32>
    %16 = tpu.matmul %8, %7, %cst {dimension_numbers = #tpu.dot_dimension_numbers<[1], [0], [0], [1], [0, 0, 1, 1], [], []>} : vector<8x128xf32>, vector<128x512xf32>, vector<8x512xf32> -> vector<8x512xf32>
    %17 = arith.addf %15, %16 : vector<8x512xf32>
    %18 = vector.extract_strided_slice %17 {offsets = [0, 0], sizes = [8, 128], strides = [1, 1]} : vector<8x512xf32> to vector<8x128xf32>
    %19 = arith.negf %18 : vector<8x128xf32>
    %20 = math.exp %19 : vector<8x128xf32>
    %cst_13 = arith.constant 1.000000e+00 : f32
    %21 = vector.broadcast %cst_13 : f32 to vector<8x128xf32>
    %22 = arith.addf %21, %20 : vector<8x128xf32>
    %23 = arith.divf %21, %22 : vector<8x128xf32>
    %24 = vector.extract_strided_slice %17 {offsets = [0, 128], sizes = [8, 128], strides = [1, 1]} : vector<8x512xf32> to vector<8x128xf32>
    %25 = arith.negf %24 : vector<8x128xf32>
    %26 = math.exp %25 : vector<8x128xf32>
    %cst_14 = arith.constant 1.000000e+00 : f32
    %27 = vector.broadcast %cst_14 : f32 to vector<8x128xf32>
    %28 = arith.addf %27, %26 : vector<8x128xf32>
    %29 = arith.divf %27, %28 : vector<8x128xf32>
    %30 = vector.extract_strided_slice %17 {offsets = [0, 256], sizes = [8, 128], strides = [1, 1]} : vector<8x512xf32> to vector<8x128xf32>
    %31 = math.tanh %30 : vector<8x128xf32>
    %32 = vector.extract_strided_slice %17 {offsets = [0, 384], sizes = [8, 128], strides = [1, 1]} : vector<8x512xf32> to vector<8x128xf32>
    %33 = arith.negf %32 : vector<8x128xf32>
    %34 = math.exp %33 : vector<8x128xf32>
    %cst_15 = arith.constant 1.000000e+00 : f32
    %35 = vector.broadcast %cst_15 : f32 to vector<8x128xf32>
    %36 = arith.addf %35, %34 : vector<8x128xf32>
    %37 = arith.divf %35, %36 : vector<8x128xf32>
    %38 = arith.mulf %29, %9 : vector<8x128xf32>
    %39 = arith.mulf %23, %31 : vector<8x128xf32>
    %40 = arith.addf %38, %39 : vector<8x128xf32>
    %41 = math.tanh %40 : vector<8x128xf32>
    %42 = arith.mulf %37, %41 : vector<8x128xf32>
    %43 = vector.extract_strided_slice %4 {offsets = [0, 1], sizes = [8, 1], strides = [1, 1]} : vector<8x8xf32> to vector<8x1xf32>
    %44 = vector.broadcast %43 : vector<8x1xf32> to vector<8x512xf32>
    %45 = vector.broadcast %5 : vector<1x512xf32> to vector<8x512xf32>
    %46 = arith.mulf %44, %45 : vector<8x512xf32>
    %47 = vector.broadcast %6 : vector<1x512xf32> to vector<8x512xf32>
    %48 = arith.addf %46, %47 : vector<8x512xf32>
    %cst_16 = arith.constant dense<0.000000e+00> : vector<8x512xf32>
    %49 = tpu.matmul %42, %7, %cst_16 {dimension_numbers = #tpu.dot_dimension_numbers<[1], [0], [0], [1], [0, 0, 1, 1], [], []>} : vector<8x128xf32>, vector<128x512xf32>, vector<8x512xf32> -> vector<8x512xf32>
    %50 = arith.addf %48, %49 : vector<8x512xf32>
    %51 = vector.extract_strided_slice %50 {offsets = [0, 0], sizes = [8, 128], strides = [1, 1]} : vector<8x512xf32> to vector<8x128xf32>
    %52 = arith.negf %51 : vector<8x128xf32>
    %53 = math.exp %52 : vector<8x128xf32>
    %cst_17 = arith.constant 1.000000e+00 : f32
    %54 = vector.broadcast %cst_17 : f32 to vector<8x128xf32>
    %55 = arith.addf %54, %53 : vector<8x128xf32>
    %56 = arith.divf %54, %55 : vector<8x128xf32>
    %57 = vector.extract_strided_slice %50 {offsets = [0, 128], sizes = [8, 128], strides = [1, 1]} : vector<8x512xf32> to vector<8x128xf32>
    %58 = arith.negf %57 : vector<8x128xf32>
    %59 = math.exp %58 : vector<8x128xf32>
    %cst_18 = arith.constant 1.000000e+00 : f32
    %60 = vector.broadcast %cst_18 : f32 to vector<8x128xf32>
    %61 = arith.addf %60, %59 : vector<8x128xf32>
    %62 = arith.divf %60, %61 : vector<8x128xf32>
    %63 = vector.extract_strided_slice %50 {offsets = [0, 256], sizes = [8, 128], strides = [1, 1]} : vector<8x512xf32> to vector<8x128xf32>
    %64 = math.tanh %63 : vector<8x128xf32>
    %65 = vector.extract_strided_slice %50 {offsets = [0, 384], sizes = [8, 128], strides = [1, 1]} : vector<8x512xf32> to vector<8x128xf32>
    %66 = arith.negf %65 : vector<8x128xf32>
    %67 = math.exp %66 : vector<8x128xf32>
    %cst_19 = arith.constant 1.000000e+00 : f32
    %68 = vector.broadcast %cst_19 : f32 to vector<8x128xf32>
    %69 = arith.addf %68, %67 : vector<8x128xf32>
    %70 = arith.divf %68, %69 : vector<8x128xf32>
    %71 = arith.mulf %62, %40 : vector<8x128xf32>
    %72 = arith.mulf %56, %64 : vector<8x128xf32>
    %73 = arith.addf %71, %72 : vector<8x128xf32>
    %74 = math.tanh %73 : vector<8x128xf32>
    %75 = arith.mulf %70, %74 : vector<8x128xf32>
    %76 = vector.extract_strided_slice %4 {offsets = [0, 2], sizes = [8, 1], strides = [1, 1]} : vector<8x8xf32> to vector<8x1xf32>
    %77 = vector.broadcast %76 : vector<8x1xf32> to vector<8x512xf32>
    %78 = vector.broadcast %5 : vector<1x512xf32> to vector<8x512xf32>
    %79 = arith.mulf %77, %78 : vector<8x512xf32>
    %80 = vector.broadcast %6 : vector<1x512xf32> to vector<8x512xf32>
    %81 = arith.addf %79, %80 : vector<8x512xf32>
    %cst_20 = arith.constant dense<0.000000e+00> : vector<8x512xf32>
    %82 = tpu.matmul %75, %7, %cst_20 {dimension_numbers = #tpu.dot_dimension_numbers<[1], [0], [0], [1], [0, 0, 1, 1], [], []>} : vector<8x128xf32>, vector<128x512xf32>, vector<8x512xf32> -> vector<8x512xf32>
    %83 = arith.addf %81, %82 : vector<8x512xf32>
    %84 = vector.extract_strided_slice %83 {offsets = [0, 0], sizes = [8, 128], strides = [1, 1]} : vector<8x512xf32> to vector<8x128xf32>
    %85 = arith.negf %84 : vector<8x128xf32>
    %86 = math.exp %85 : vector<8x128xf32>
    %cst_21 = arith.constant 1.000000e+00 : f32
    %87 = vector.broadcast %cst_21 : f32 to vector<8x128xf32>
    %88 = arith.addf %87, %86 : vector<8x128xf32>
    %89 = arith.divf %87, %88 : vector<8x128xf32>
    %90 = vector.extract_strided_slice %83 {offsets = [0, 128], sizes = [8, 128], strides = [1, 1]} : vector<8x512xf32> to vector<8x128xf32>
    %91 = arith.negf %90 : vector<8x128xf32>
    %92 = math.exp %91 : vector<8x128xf32>
    %cst_22 = arith.constant 1.000000e+00 : f32
    %93 = vector.broadcast %cst_22 : f32 to vector<8x128xf32>
    %94 = arith.addf %93, %92 : vector<8x128xf32>
    %95 = arith.divf %93, %94 : vector<8x128xf32>
    %96 = vector.extract_strided_slice %83 {offsets = [0, 256], sizes = [8, 128], strides = [1, 1]} : vector<8x512xf32> to vector<8x128xf32>
    %97 = math.tanh %96 : vector<8x128xf32>
    %98 = vector.extract_strided_slice %83 {offsets = [0, 384], sizes = [8, 128], strides = [1, 1]} : vector<8x512xf32> to vector<8x128xf32>
    %99 = arith.negf %98 : vector<8x128xf32>
    %100 = math.exp %99 : vector<8x128xf32>
    %cst_23 = arith.constant 1.000000e+00 : f32
    %101 = vector.broadcast %cst_23 : f32 to vector<8x128xf32>
    %102 = arith.addf %101, %100 : vector<8x128xf32>
    %103 = arith.divf %101, %102 : vector<8x128xf32>
    %104 = arith.mulf %95, %73 : vector<8x128xf32>
    %105 = arith.mulf %89, %97 : vector<8x128xf32>
    %106 = arith.addf %104, %105 : vector<8x128xf32>
    %107 = math.tanh %106 : vector<8x128xf32>
    %108 = arith.mulf %103, %107 : vector<8x128xf32>
    %109 = vector.extract_strided_slice %4 {offsets = [0, 3], sizes = [8, 1], strides = [1, 1]} : vector<8x8xf32> to vector<8x1xf32>
    %110 = vector.broadcast %109 : vector<8x1xf32> to vector<8x512xf32>
    %111 = vector.broadcast %5 : vector<1x512xf32> to vector<8x512xf32>
    %112 = arith.mulf %110, %111 : vector<8x512xf32>
    %113 = vector.broadcast %6 : vector<1x512xf32> to vector<8x512xf32>
    %114 = arith.addf %112, %113 : vector<8x512xf32>
    %cst_24 = arith.constant dense<0.000000e+00> : vector<8x512xf32>
    %115 = tpu.matmul %108, %7, %cst_24 {dimension_numbers = #tpu.dot_dimension_numbers<[1], [0], [0], [1], [0, 0, 1, 1], [], []>} : vector<8x128xf32>, vector<128x512xf32>, vector<8x512xf32> -> vector<8x512xf32>
    %116 = arith.addf %114, %115 : vector<8x512xf32>
    %117 = vector.extract_strided_slice %116 {offsets = [0, 0], sizes = [8, 128], strides = [1, 1]} : vector<8x512xf32> to vector<8x128xf32>
    %118 = arith.negf %117 : vector<8x128xf32>
    %119 = math.exp %118 : vector<8x128xf32>
    %cst_25 = arith.constant 1.000000e+00 : f32
    %120 = vector.broadcast %cst_25 : f32 to vector<8x128xf32>
    %121 = arith.addf %120, %119 : vector<8x128xf32>
    %122 = arith.divf %120, %121 : vector<8x128xf32>
    %123 = vector.extract_strided_slice %116 {offsets = [0, 128], sizes = [8, 128], strides = [1, 1]} : vector<8x512xf32> to vector<8x128xf32>
    %124 = arith.negf %123 : vector<8x128xf32>
    %125 = math.exp %124 : vector<8x128xf32>
    %cst_26 = arith.constant 1.000000e+00 : f32
    %126 = vector.broadcast %cst_26 : f32 to vector<8x128xf32>
    %127 = arith.addf %126, %125 : vector<8x128xf32>
    %128 = arith.divf %126, %127 : vector<8x128xf32>
    %129 = vector.extract_strided_slice %116 {offsets = [0, 256], sizes = [8, 128], strides = [1, 1]} : vector<8x512xf32> to vector<8x128xf32>
    %130 = math.tanh %129 : vector<8x128xf32>
    %131 = vector.extract_strided_slice %116 {offsets = [0, 384], sizes = [8, 128], strides = [1, 1]} : vector<8x512xf32> to vector<8x128xf32>
    %132 = arith.negf %131 : vector<8x128xf32>
    %133 = math.exp %132 : vector<8x128xf32>
    %cst_27 = arith.constant 1.000000e+00 : f32
    %134 = vector.broadcast %cst_27 : f32 to vector<8x128xf32>
    %135 = arith.addf %134, %133 : vector<8x128xf32>
    %136 = arith.divf %134, %135 : vector<8x128xf32>
    %137 = arith.mulf %128, %106 : vector<8x128xf32>
    %138 = arith.mulf %122, %130 : vector<8x128xf32>
    %139 = arith.addf %137, %138 : vector<8x128xf32>
    %140 = math.tanh %139 : vector<8x128xf32>
    %141 = arith.mulf %136, %140 : vector<8x128xf32>
    %142 = vector.extract_strided_slice %4 {offsets = [0, 4], sizes = [8, 1], strides = [1, 1]} : vector<8x8xf32> to vector<8x1xf32>
    %143 = vector.broadcast %142 : vector<8x1xf32> to vector<8x512xf32>
    %144 = vector.broadcast %5 : vector<1x512xf32> to vector<8x512xf32>
    %145 = arith.mulf %143, %144 : vector<8x512xf32>
    %146 = vector.broadcast %6 : vector<1x512xf32> to vector<8x512xf32>
    %147 = arith.addf %145, %146 : vector<8x512xf32>
    %cst_28 = arith.constant dense<0.000000e+00> : vector<8x512xf32>
    %148 = tpu.matmul %141, %7, %cst_28 {dimension_numbers = #tpu.dot_dimension_numbers<[1], [0], [0], [1], [0, 0, 1, 1], [], []>} : vector<8x128xf32>, vector<128x512xf32>, vector<8x512xf32> -> vector<8x512xf32>
    %149 = arith.addf %147, %148 : vector<8x512xf32>
    %150 = vector.extract_strided_slice %149 {offsets = [0, 0], sizes = [8, 128], strides = [1, 1]} : vector<8x512xf32> to vector<8x128xf32>
    %151 = arith.negf %150 : vector<8x128xf32>
    %152 = math.exp %151 : vector<8x128xf32>
    %cst_29 = arith.constant 1.000000e+00 : f32
    %153 = vector.broadcast %cst_29 : f32 to vector<8x128xf32>
    %154 = arith.addf %153, %152 : vector<8x128xf32>
    %155 = arith.divf %153, %154 : vector<8x128xf32>
    %156 = vector.extract_strided_slice %149 {offsets = [0, 128], sizes = [8, 128], strides = [1, 1]} : vector<8x512xf32> to vector<8x128xf32>
    %157 = arith.negf %156 : vector<8x128xf32>
    %158 = math.exp %157 : vector<8x128xf32>
    %cst_30 = arith.constant 1.000000e+00 : f32
    %159 = vector.broadcast %cst_30 : f32 to vector<8x128xf32>
    %160 = arith.addf %159, %158 : vector<8x128xf32>
    %161 = arith.divf %159, %160 : vector<8x128xf32>
    %162 = vector.extract_strided_slice %149 {offsets = [0, 256], sizes = [8, 128], strides = [1, 1]} : vector<8x512xf32> to vector<8x128xf32>
    %163 = math.tanh %162 : vector<8x128xf32>
    %164 = vector.extract_strided_slice %149 {offsets = [0, 384], sizes = [8, 128], strides = [1, 1]} : vector<8x512xf32> to vector<8x128xf32>
    %165 = arith.negf %164 : vector<8x128xf32>
    %166 = math.exp %165 : vector<8x128xf32>
    %cst_31 = arith.constant 1.000000e+00 : f32
    %167 = vector.broadcast %cst_31 : f32 to vector<8x128xf32>
    %168 = arith.addf %167, %166 : vector<8x128xf32>
    %169 = arith.divf %167, %168 : vector<8x128xf32>
    %170 = arith.mulf %161, %139 : vector<8x128xf32>
    %171 = arith.mulf %155, %163 : vector<8x128xf32>
    %172 = arith.addf %170, %171 : vector<8x128xf32>
    %173 = math.tanh %172 : vector<8x128xf32>
    %174 = arith.mulf %169, %173 : vector<8x128xf32>
    %175 = vector.extract_strided_slice %4 {offsets = [0, 5], sizes = [8, 1], strides = [1, 1]} : vector<8x8xf32> to vector<8x1xf32>
    %176 = vector.broadcast %175 : vector<8x1xf32> to vector<8x512xf32>
    %177 = vector.broadcast %5 : vector<1x512xf32> to vector<8x512xf32>
    %178 = arith.mulf %176, %177 : vector<8x512xf32>
    %179 = vector.broadcast %6 : vector<1x512xf32> to vector<8x512xf32>
    %180 = arith.addf %178, %179 : vector<8x512xf32>
    %cst_32 = arith.constant dense<0.000000e+00> : vector<8x512xf32>
    %181 = tpu.matmul %174, %7, %cst_32 {dimension_numbers = #tpu.dot_dimension_numbers<[1], [0], [0], [1], [0, 0, 1, 1], [], []>} : vector<8x128xf32>, vector<128x512xf32>, vector<8x512xf32> -> vector<8x512xf32>
    %182 = arith.addf %180, %181 : vector<8x512xf32>
    %183 = vector.extract_strided_slice %182 {offsets = [0, 0], sizes = [8, 128], strides = [1, 1]} : vector<8x512xf32> to vector<8x128xf32>
    %184 = arith.negf %183 : vector<8x128xf32>
    %185 = math.exp %184 : vector<8x128xf32>
    %cst_33 = arith.constant 1.000000e+00 : f32
    %186 = vector.broadcast %cst_33 : f32 to vector<8x128xf32>
    %187 = arith.addf %186, %185 : vector<8x128xf32>
    %188 = arith.divf %186, %187 : vector<8x128xf32>
    %189 = vector.extract_strided_slice %182 {offsets = [0, 128], sizes = [8, 128], strides = [1, 1]} : vector<8x512xf32> to vector<8x128xf32>
    %190 = arith.negf %189 : vector<8x128xf32>
    %191 = math.exp %190 : vector<8x128xf32>
    %cst_34 = arith.constant 1.000000e+00 : f32
    %192 = vector.broadcast %cst_34 : f32 to vector<8x128xf32>
    %193 = arith.addf %192, %191 : vector<8x128xf32>
    %194 = arith.divf %192, %193 : vector<8x128xf32>
    %195 = vector.extract_strided_slice %182 {offsets = [0, 256], sizes = [8, 128], strides = [1, 1]} : vector<8x512xf32> to vector<8x128xf32>
    %196 = math.tanh %195 : vector<8x128xf32>
    %197 = vector.extract_strided_slice %182 {offsets = [0, 384], sizes = [8, 128], strides = [1, 1]} : vector<8x512xf32> to vector<8x128xf32>
    %198 = arith.negf %197 : vector<8x128xf32>
    %199 = math.exp %198 : vector<8x128xf32>
    %cst_35 = arith.constant 1.000000e+00 : f32
    %200 = vector.broadcast %cst_35 : f32 to vector<8x128xf32>
    %201 = arith.addf %200, %199 : vector<8x128xf32>
    %202 = arith.divf %200, %201 : vector<8x128xf32>
    %203 = arith.mulf %194, %172 : vector<8x128xf32>
    %204 = arith.mulf %188, %196 : vector<8x128xf32>
    %205 = arith.addf %203, %204 : vector<8x128xf32>
    %206 = math.tanh %205 : vector<8x128xf32>
    %207 = arith.mulf %202, %206 : vector<8x128xf32>
    %208 = vector.extract_strided_slice %4 {offsets = [0, 6], sizes = [8, 1], strides = [1, 1]} : vector<8x8xf32> to vector<8x1xf32>
    %209 = vector.broadcast %208 : vector<8x1xf32> to vector<8x512xf32>
    %210 = vector.broadcast %5 : vector<1x512xf32> to vector<8x512xf32>
    %211 = arith.mulf %209, %210 : vector<8x512xf32>
    %212 = vector.broadcast %6 : vector<1x512xf32> to vector<8x512xf32>
    %213 = arith.addf %211, %212 : vector<8x512xf32>
    %cst_36 = arith.constant dense<0.000000e+00> : vector<8x512xf32>
    %214 = tpu.matmul %207, %7, %cst_36 {dimension_numbers = #tpu.dot_dimension_numbers<[1], [0], [0], [1], [0, 0, 1, 1], [], []>} : vector<8x128xf32>, vector<128x512xf32>, vector<8x512xf32> -> vector<8x512xf32>
    %215 = arith.addf %213, %214 : vector<8x512xf32>
    %216 = vector.extract_strided_slice %215 {offsets = [0, 0], sizes = [8, 128], strides = [1, 1]} : vector<8x512xf32> to vector<8x128xf32>
    %217 = arith.negf %216 : vector<8x128xf32>
    %218 = math.exp %217 : vector<8x128xf32>
    %cst_37 = arith.constant 1.000000e+00 : f32
    %219 = vector.broadcast %cst_37 : f32 to vector<8x128xf32>
    %220 = arith.addf %219, %218 : vector<8x128xf32>
    %221 = arith.divf %219, %220 : vector<8x128xf32>
    %222 = vector.extract_strided_slice %215 {offsets = [0, 128], sizes = [8, 128], strides = [1, 1]} : vector<8x512xf32> to vector<8x128xf32>
    %223 = arith.negf %222 : vector<8x128xf32>
    %224 = math.exp %223 : vector<8x128xf32>
    %cst_38 = arith.constant 1.000000e+00 : f32
    %225 = vector.broadcast %cst_38 : f32 to vector<8x128xf32>
    %226 = arith.addf %225, %224 : vector<8x128xf32>
    %227 = arith.divf %225, %226 : vector<8x128xf32>
    %228 = vector.extract_strided_slice %215 {offsets = [0, 256], sizes = [8, 128], strides = [1, 1]} : vector<8x512xf32> to vector<8x128xf32>
    %229 = math.tanh %228 : vector<8x128xf32>
    %230 = vector.extract_strided_slice %215 {offsets = [0, 384], sizes = [8, 128], strides = [1, 1]} : vector<8x512xf32> to vector<8x128xf32>
    %231 = arith.negf %230 : vector<8x128xf32>
    %232 = math.exp %231 : vector<8x128xf32>
    %cst_39 = arith.constant 1.000000e+00 : f32
    %233 = vector.broadcast %cst_39 : f32 to vector<8x128xf32>
    %234 = arith.addf %233, %232 : vector<8x128xf32>
    %235 = arith.divf %233, %234 : vector<8x128xf32>
    %236 = arith.mulf %227, %205 : vector<8x128xf32>
    %237 = arith.mulf %221, %229 : vector<8x128xf32>
    %238 = arith.addf %236, %237 : vector<8x128xf32>
    %239 = math.tanh %238 : vector<8x128xf32>
    %240 = arith.mulf %235, %239 : vector<8x128xf32>
    %241 = vector.extract_strided_slice %4 {offsets = [0, 7], sizes = [8, 1], strides = [1, 1]} : vector<8x8xf32> to vector<8x1xf32>
    %242 = vector.broadcast %241 : vector<8x1xf32> to vector<8x512xf32>
    %243 = vector.broadcast %5 : vector<1x512xf32> to vector<8x512xf32>
    %244 = arith.mulf %242, %243 : vector<8x512xf32>
    %245 = vector.broadcast %6 : vector<1x512xf32> to vector<8x512xf32>
    %246 = arith.addf %244, %245 : vector<8x512xf32>
    %cst_40 = arith.constant dense<0.000000e+00> : vector<8x512xf32>
    %247 = tpu.matmul %240, %7, %cst_40 {dimension_numbers = #tpu.dot_dimension_numbers<[1], [0], [0], [1], [0, 0, 1, 1], [], []>} : vector<8x128xf32>, vector<128x512xf32>, vector<8x512xf32> -> vector<8x512xf32>
    %248 = arith.addf %246, %247 : vector<8x512xf32>
    %249 = vector.extract_strided_slice %248 {offsets = [0, 0], sizes = [8, 128], strides = [1, 1]} : vector<8x512xf32> to vector<8x128xf32>
    %250 = arith.negf %249 : vector<8x128xf32>
    %251 = math.exp %250 : vector<8x128xf32>
    %cst_41 = arith.constant 1.000000e+00 : f32
    %252 = vector.broadcast %cst_41 : f32 to vector<8x128xf32>
    %253 = arith.addf %252, %251 : vector<8x128xf32>
    %254 = arith.divf %252, %253 : vector<8x128xf32>
    %255 = vector.extract_strided_slice %248 {offsets = [0, 128], sizes = [8, 128], strides = [1, 1]} : vector<8x512xf32> to vector<8x128xf32>
    %256 = arith.negf %255 : vector<8x128xf32>
    %257 = math.exp %256 : vector<8x128xf32>
    %cst_42 = arith.constant 1.000000e+00 : f32
    %258 = vector.broadcast %cst_42 : f32 to vector<8x128xf32>
    %259 = arith.addf %258, %257 : vector<8x128xf32>
    %260 = arith.divf %258, %259 : vector<8x128xf32>
    %261 = vector.extract_strided_slice %248 {offsets = [0, 256], sizes = [8, 128], strides = [1, 1]} : vector<8x512xf32> to vector<8x128xf32>
    %262 = math.tanh %261 : vector<8x128xf32>
    %263 = vector.extract_strided_slice %248 {offsets = [0, 384], sizes = [8, 128], strides = [1, 1]} : vector<8x512xf32> to vector<8x128xf32>
    %264 = arith.negf %263 : vector<8x128xf32>
    %265 = math.exp %264 : vector<8x128xf32>
    %cst_43 = arith.constant 1.000000e+00 : f32
    %266 = vector.broadcast %cst_43 : f32 to vector<8x128xf32>
    %267 = arith.addf %266, %265 : vector<8x128xf32>
    %268 = arith.divf %266, %267 : vector<8x128xf32>
    %269 = arith.mulf %260, %238 : vector<8x128xf32>
    %270 = arith.mulf %254, %262 : vector<8x128xf32>
    %271 = arith.addf %269, %270 : vector<8x128xf32>
    %272 = math.tanh %271 : vector<8x128xf32>
    %273 = arith.mulf %268, %272 : vector<8x128xf32>
    %c0_44 = arith.constant 0 : index
    %c0_45 = arith.constant 0 : index
    %274 = vector.load %arg9[%c0_44, %c0_45] : memref<8x128xf32, #tpu.memory_space<vmem>>, vector<8x128xf32>
    tpu.vector_store %arg9[%c0_44, %c0_45], %273 {strides = array<i32>} : memref<8x128xf32, #tpu.memory_space<vmem>>, vector<8x128xf32>,
    %c0_46 = arith.constant 0 : index
    %c0_47 = arith.constant 0 : index
    %275 = vector.load %arg10[%c0_46, %c0_47] : memref<8x128xf32, #tpu.memory_space<vmem>>, vector<8x128xf32>
    tpu.vector_store %arg10[%c0_46, %c0_47], %271 {strides = array<i32>} : memref<8x128xf32, #tpu.memory_space<vmem>>, vector<8x128xf32>,
    %c0_i32_48 = arith.constant 0 : i32
    %276 = arith.cmpi eq, %arg1, %c0_i32_48 : i32
    %277 = arith.extui %276 : i1 to i32
    %c0_i32_49 = arith.constant 0 : i32
    %278 = arith.cmpi ne, %277, %c0_i32_49 : i32
    scf.if %278 {
      %c0_50 = arith.constant 0 : index
      %c0_51 = arith.constant 0 : index
      %279 = vector.load %arg6[%c0_50, %c0_51] : memref<128x128xf32, #tpu.memory_space<vmem>>, vector<128x128xf32>
      %cst_52 = arith.constant dense<0.000000e+00> : vector<8x128xf32>
      %280 = tpu.matmul %273, %279, %cst_52 {dimension_numbers = #tpu.dot_dimension_numbers<[1], [0], [0], [1], [0, 0, 1, 1], [], []>} : vector<8x128xf32>, vector<128x128xf32>, vector<8x128xf32> -> vector<8x128xf32>
      %c0_53 = arith.constant 0 : index
      %c0_54 = arith.constant 0 : index
      %281 = vector.load %arg7[%c0_53, %c0_54] : memref<1x128xf32, #tpu.memory_space<vmem>>, vector<1x128xf32>
      %282 = vector.broadcast %281 : vector<1x128xf32> to vector<8x128xf32>
      %283 = arith.addf %280, %282 : vector<8x128xf32>
      %c0_55 = arith.constant 0 : index
      %c0_56 = arith.constant 0 : index
      %284 = vector.load %arg8[%c0_55, %c0_56] : memref<8x128xf32, #tpu.memory_space<vmem>>, vector<8x128xf32>
      tpu.vector_store %arg8[%c0_55, %c0_56], %283 {strides = array<i32>} : memref<8x128xf32, #tpu.memory_space<vmem>>, vector<8x128xf32>,
    } else {
    }
    return
  }
  func.func @transform_0(%arg0: i32, %arg1: i32) -> (i32, i32, i32) {
    %c0_i32 = arith.constant 0 : i32
    %c0_i32_0 = arith.constant 0 : i32
    return %arg1, %arg0, %c0_i32 : i32, i32, i32
  }
  func.func @transform_1(%arg0: i32, %arg1: i32) -> (i32, i32) {
    %c0_i32 = arith.constant 0 : i32
    %c0_i32_0 = arith.constant 0 : i32
    %c0_i32_1 = arith.constant 0 : i32
    return %c0_i32, %c0_i32_0 : i32, i32
  }
  func.func @transform_2(%arg0: i32, %arg1: i32) -> (i32, i32) {
    %c0_i32 = arith.constant 0 : i32
    %c0_i32_0 = arith.constant 0 : i32
    %c0_i32_1 = arith.constant 0 : i32
    return %c0_i32, %c0_i32_0 : i32, i32
  }
  func.func @transform_3(%arg0: i32, %arg1: i32) -> (i32, i32) {
    %c0_i32 = arith.constant 0 : i32
    %c0_i32_0 = arith.constant 0 : i32
    %c0_i32_1 = arith.constant 0 : i32
    return %c0_i32, %c0_i32_0 : i32, i32
  }
  func.func @transform_4(%arg0: i32, %arg1: i32) -> (i32, i32) {
    %c0_i32 = arith.constant 0 : i32
    %c0_i32_0 = arith.constant 0 : i32
    %c0_i32_1 = arith.constant 0 : i32
    return %c0_i32, %c0_i32_0 : i32, i32
  }
  func.func @transform_5(%arg0: i32, %arg1: i32) -> (i32, i32) {
    %c0_i32 = arith.constant 0 : i32
    %c0_i32_0 = arith.constant 0 : i32
    %c0_i32_1 = arith.constant 0 : i32
    return %c0_i32, %c0_i32_0 : i32, i32
  }
  func.func @transform_6(%arg0: i32, %arg1: i32) -> (i32, i32) {
    %c0_i32 = arith.constant 0 : i32
    %c0_i32_0 = arith.constant 0 : i32
    return %arg0, %c0_i32 : i32, i32
  }
}

</mosaic_0001>

<llo_original>
// kernel: tpu_custom_call.1
$region0: #{tpu_custom_call.1}
  #allocation0 [shape = 'u32[]', space=smem, size = 0x4, offset = 0x4, fixed_abs, tag = 'smem constant byte address 0x4 - core index']
  #allocation1 [shape = 'u32[72,128]{1,0:T(1,128)}', space=vmem, size = 0x9000, scoped, tag = 'internal scratch']
  #allocation2 [shape = 'f32[8,128]{1,0:T(8,128)}', space=vmem, size = 0x1000, scoped, tag = 'scratch operand']
  #allocation3 [shape = 'f32[8,128]{1,0:T(8,128)}', space=vmem, size = 0x1000, scoped, tag = 'scratch operand']
  %s0 = inlined_call_operand.hbm [shape: f32[1,8,8], index: 0, kind: input, shape index: {}]
  %s1 = inlined_call_operand.hbm [shape: f32[1,512], index: 1, kind: input, shape index: {}]
  %s2 = inlined_call_operand.hbm [shape: f32[1,512], index: 2, kind: input, shape index: {}]
  %s3 = inlined_call_operand.hbm [shape: f32[128,512], index: 3, kind: input, shape index: {}]
  %s4 = inlined_call_operand.hbm [shape: f32[128,128], index: 4, kind: input, shape index: {}]
  %s5 = inlined_call_operand.vmem [shape: f32[1,128], index: 5, kind: input, shape index: {}]
  %s6 = inlined_call_operand.hbm [shape: f32[8,128], index: 6, kind: output, shape index: {}]
  %s7 = sld [smem:[#allocation0]]
  $region62: #{tpu_custom_call.1} parent=0
    _
  %s9 = ssub.s32 1, %s7
  %s10 = scalar_select 0, %s9, %s7
  $region1: #{tpu_custom_call.1} parent=0
    #allocation4 [shape = 'u8[4096]{0}', space=vmem, size = 0x1000, scoped, tag = 'input window, operand 0, single buffered']
    #allocation5 [shape = 's32[1]{0}', space=sflag, size = 0x4, scoped, tag = 'scoped memory for tpu_custom_call.1']
    #allocation6 [shape = 's32[1]{0}', space=sflag, size = 0x4, scoped, tag = 'scoped memory for tpu_custom_call.1']
    #allocation7 [shape = 'u8[2048]{0}', space=vmem, size = 0x800, scoped, tag = 'input window, operand 1, single buffered']
    #allocation8 [shape = 's32[1]{0}', space=sflag, size = 0x4, scoped, tag = 'scoped memory for tpu_custom_call.1']
    #allocation9 [shape = 'u8[2048]{0}', space=vmem, size = 0x800, scoped, tag = 'input window, operand 2, single buffered']
    #allocation10 [shape = 'u8[262144]{0}', space=vmem, size = 0x40000, scoped, tag = 'input window, operand 3, single buffered']
    #allocation11 [shape = 's32[1]{0}', space=sflag, size = 0x4, scoped, tag = 'scoped memory for tpu_custom_call.1']
    #allocation12 [shape = 'u8[65536]{0}', space=vmem, size = 0x10000, scoped, tag = 'input window, operand 4, single buffered']
    #allocation13 [shape = 'u8[4096]{0}', space=vmem, size = 0x1000, scoped, tag = 'output window, operand 0, single buffered']
    %11 = vsyncpa [#allocation5], 0
    %12 = vsyncpa [#allocation8], 0
    %13 = vsyncpa [#allocation11], 0
    %14 = vsyncpa [#allocation6], 0
    // Predicated region
    $region2: #{tpu_custom_call.1} parent=1 // pred_check
      _
    $region3: #{tpu_custom_call.1} parent=1 // pred_check_branch
      %16 = sbr.rel (0) target = $region5
    $region4: #{tpu_custom_call.1} parent=1 // pred_region
      %18 = vsyncadd [#allocation5], 0
      %s20 = sshll.u32 %s0, 4
      %s21 = int_to_ptr.hbm [resolvable:$true] %s20
      %s22 = sshll.u32 [#allocation4], 4
      %s23 = int_to_ptr.vmem [resolvable:$true] %s22
      %25 = dma.hbm_to_vmem [thread:$0]  %s21, 128, %s23, [#allocation5]
    $region5: #{tpu_custom_call.1} parent=1 // pred_fallthru
      _
    // Predicated region
    $region6: #{tpu_custom_call.1} parent=1 // pred_check
      _
    $region7: #{tpu_custom_call.1} parent=1 // pred_check_branch
      %27 = sbr.rel (0) target = $region9
    $region8: #{tpu_custom_call.1} parent=1 // pred_region
      %29 = vsyncadd [#allocation8], 0
      %s31 = sshll.u32 %s1, 4
      %s32 = int_to_ptr.hbm [resolvable:$true] %s31
      %s33 = sshll.u32 [#allocation7], 4
      %s34 = int_to_ptr.vmem [resolvable:$true] %s33
      %36 = dma.hbm_to_vmem [thread:$0]  %s32, 64, %s34, [#allocation8]
    $region9: #{tpu_custom_call.1} parent=1 // pred_fallthru
      _
    // Predicated region
    $region10: #{tpu_custom_call.1} parent=1 // pred_check
      _
    $region11: #{tpu_custom_call.1} parent=1 // pred_check_branch
      %38 = sbr.rel (0) target = $region13
    $region12: #{tpu_custom_call.1} parent=1 // pred_region
      %40 = vsyncadd [#allocation8], 0
      %s42 = sshll.u32 %s2, 4
      %s43 = int_to_ptr.hbm [resolvable:$true] %s42
      %s44 = sshll.u32 [#allocation9], 4
      %s45 = int_to_ptr.vmem [resolvable:$true] %s44
      %47 = dma.hbm_to_vmem [thread:$0]  %s43, 64, %s45, [#allocation8]
    $region13: #{tpu_custom_call.1} parent=1 // pred_fallthru
      _
    // Predicated region
    $region14: #{tpu_custom_call.1} parent=1 // pred_check
      _
    $region15: #{tpu_custom_call.1} parent=1 // pred_check_branch
      %49 = sbr.rel (0) target = $region17
    $region16: #{tpu_custom_call.1} parent=1 // pred_region
      %51 = vsyncadd [#allocation11], 0
      %s52 = sshll.u32 %s3, 4
      %s53 = int_to_ptr.hbm [resolvable:$true] %s52
      %s54 = sshll.u32 [#allocation10], 4
      %s55 = int_to_ptr.vmem [resolvable:$true] %s54
      %60 = dma.hbm_to_vmem [thread:$0]  %s53, 8192, %s55, [#allocation11], 512, 512, 32
    $region17: #{tpu_custom_call.1} parent=1 // pred_fallthru
      _
    // Predicated region
    $region18: #{tpu_custom_call.1} parent=1 // pred_check
      _
    $region19: #{tpu_custom_call.1} parent=1 // pred_check_branch
      %62 = sbr.rel (0) target = $region21
    $region20: #{tpu_custom_call.1} parent=1 // pred_region
      %64 = vsyncadd [#allocation11], 0
      %s65 = sshll.u32 %s4, 4
      %s66 = int_to_ptr.hbm [resolvable:$true] %s65
      %s67 = sshll.u32 [#allocation12], 4
      %s68 = int_to_ptr.vmem [resolvable:$true] %s67
      %73 = dma.hbm_to_vmem [thread:$0]  %s66, 2048, %s68, [#allocation11], 128, 128, 8
    $region21: #{tpu_custom_call.1} parent=1 // pred_fallthru
      _
    // Predicated region
    $region22: #{tpu_custom_call.1} parent=1 // pred_check
      _
    $region23: #{tpu_custom_call.1} parent=1 // pred_check_branch
      %75 = sbr.rel (0) target = $region25
    $region24: #{tpu_custom_call.1} parent=1 // pred_region
      _
    $region25: #{tpu_custom_call.1} parent=1 // pred_fallthru
      _
    // Predicated region
    $region26: #{tpu_custom_call.1} parent=1 // pred_check
      _
    $region27: #{tpu_custom_call.1} parent=1 // pred_check_branch
      %77 = sbr.rel (0) target = $region29
    $region28: #{tpu_custom_call.1} parent=1 // pred_region
      %79 = dma.done [#allocation5], 128
    $region29: #{tpu_custom_call.1} parent=1 // pred_fallthru
      _
    // Predicated region
    $region30: #{tpu_custom_call.1} parent=1 // pred_check
      _
    $region31: #{tpu_custom_call.1} parent=1 // pred_check_branch
      %81 = sbr.rel (0) target = $region33
    $region32: #{tpu_custom_call.1} parent=1 // pred_region
      %83 = dma.done [#allocation8], 64
    $region33: #{tpu_custom_call.1} parent=1 // pred_fallthru
      _
    // Predicated region
    $region34: #{tpu_custom_call.1} parent=1 // pred_check
      _
    $region35: #{tpu_custom_call.1} parent=1 // pred_check_branch
      %85 = sbr.rel (0) target = $region37
    $region36: #{tpu_custom_call.1} parent=1 // pred_region
      %87 = dma.done [#allocation8], 64
    $region37: #{tpu_custom_call.1} parent=1 // pred_fallthru
      _
    // Predicated region
    $region38: #{tpu_custom_call.1} parent=1 // pred_check
      _
    $region39: #{tpu_custom_call.1} parent=1 // pred_check_branch
      %89 = sbr.rel (0) target = $region41
    $region40: #{tpu_custom_call.1} parent=1 // pred_region
      %91 = dma.done [#allocation11], 8192
    $region41: #{tpu_custom_call.1} parent=1 // pred_fallthru
      _
    // Predicated region
    $region42: #{tpu_custom_call.1} parent=1 // pred_check
      _
    $region43: #{tpu_custom_call.1} parent=1 // pred_check_branch
      %93 = sbr.rel (0) target = $region45
    $region44: #{tpu_custom_call.1} parent=1 // pred_region
      %95 = dma.done [#allocation11], 2048
    $region45: #{tpu_custom_call.1} parent=1 // pred_fallthru
      _
    %p96 = scmp.eq.s32.totalorder 0, 0
    // Predicated region
    $region46: #{tpu_custom_call.1} parent=1 // pred_check
      %p97 = pneg %p96
    $region47: #{tpu_custom_call.1} parent=1 // pred_check_branch
      %99 = sbr.rel (%p97) target = $region49
    $region48: #{tpu_custom_call.1} parent=1 // pred_region
      %100 = vst [vmem:[#allocation2] sm:$0xff] 0.0
      %101 = vst [vmem:[#allocation3] sm:$0xff] 0.0
    $region49: #{tpu_custom_call.1} parent=1 // pred_fallthru
      _
    %v102 = vld [vmem:[#allocation4] sm:$0xff]
    %v103 = vld [vmem:[#allocation7] sm:$0xf]
    %v104 = vld [vmem:[#allocation9] sm:$0xf]
    %v105 = vld [vmem:[#allocation10] sm:$0xff]
    %v106 = vld [vmem:[#allocation10 + $0x8] sm:$0xff]
    %v107 = vld [vmem:[#allocation10 + $0x10] sm:$0xff]
    %v108 = vld [vmem:[#allocation10 + $0x18] sm:$0xff]
    %v109 = vld [vmem:[#allocation10 + $0x20] sm:$0xff]
    %v110 = vld [vmem:[#allocation10 + $0x28] sm:$0xff]
    %v111 = vld [vmem:[#allocation10 + $0x30] sm:$0xff]
    %v112 = vld [vmem:[#allocation10 + $0x38] sm:$0xff]
    %v113 = vld [vmem:[#allocation10 + $0x40] sm:$0xff]
    %v114 = vld [vmem:[#allocation10 + $0x48] sm:$0xff]
    %v115 = vld [vmem:[#allocation10 + $0x50] sm:$0xff]
    %v116 = vld [vmem:[#allocation10 + $0x58] sm:$0xff]
    %v117 = vld [vmem:[#allocation10 + $0x60] sm:$0xff]
    %v118 = vld [vmem:[#allocation10 + $0x68] sm:$0xff]
    %v119 = vld [vmem:[#allocation10 + $0x70] sm:$0xff]
    %v120 = vld [vmem:[#allocation10 + $0x78] sm:$0xff]
    %v121 = vld [vmem:[#allocation10 + $0x80] sm:$0xff]
    %v122 = vld [vmem:[#allocation10 + $0x88] sm:$0xff]
    %v123 = vld [vmem:[#allocation10 + $0x90] sm:$0xff]
    %v124 = vld [vmem:[#allocation10 + $0x98] sm:$0xff]
    %v125 = vld [vmem:[#allocation10 + $0xa0] sm:$0xff]
    %v126 = vld [vmem:[#allocation10 + $0xa8] sm:$0xff]
    %v127 = vld [vmem:[#allocation10 + $0xb0] sm:$0xff]
    %v128 = vld [vmem:[#allocation10 + $0xb8] sm:$0xff]
    %v129 = vld [vmem:[#allocation10 + $0xc0] sm:$0xff]
    %v130 = vld [vmem:[#allocation10 + $0xc8] sm:$0xff]
    %v131 = vld [vmem:[#allocation10 + $0xd0] sm:$0xff]
    %v132 = vld [vmem:[#allocation10 + $0xd8] sm:$0xff]
    %v133 = vld [vmem:[#allocation10 + $0xe0] sm:$0xff]
    %v134 = vld [vmem:[#allocation10 + $0xe8] sm:$0xff]
    %v135 = vld [vmem:[#allocation10 + $0xf0] sm:$0xff]
    %v136 = vld [vmem:[#allocation10 + $0xf8] sm:$0xff]
    %v137 = vld [vmem:[#allocation10 + $0x100] sm:$0xff]
    %v138 = vld [vmem:[#allocation10 + $0x108] sm:$0xff]
    %v139 = vld [vmem:[#allocation10 + $0x110] sm:$0xff]
    %v140 = vld [vmem:[#allocation10 + $0x118] sm:$0xff]
    %v141 = vld [vmem:[#allocation10 + $0x120] sm:$0xff]
    %v142 = vld [vmem:[#allocation10 + $0x128] sm:$0xff]
    %v143 = vld [vmem:[#allocation10 + $0x130] sm:$0xff]
    %v144 = vld [vmem:[#allocation10 + $0x138] sm:$0xff]
    %v145 = vld [vmem:[#allocation10 + $0x140] sm:$0xff]
    %v146 = vld [vmem:[#allocation10 + $0x148] sm:$0xff]
    %v147 = vld [vmem:[#allocation10 + $0x150] sm:$0xff]
    %v148 = vld [vmem:[#allocation10 + $0x158] sm:$0xff]
    %v149 = vld [vmem:[#allocation10 + $0x160] sm:$0xff]
    %v150 = vld [vmem:[#allocation10 + $0x168] sm:$0xff]
    %v151 = vld [vmem:[#allocation10 + $0x170] sm:$0xff]
    %v152 = vld [vmem:[#allocation10 + $0x178] sm:$0xff]
    %v153 = vld [vmem:[#allocation10 + $0x180] sm:$0xff]
    %v154 = vld [vmem:[#allocation10 + $0x188] sm:$0xff]
    %v155 = vld [vmem:[#allocation10 + $0x190] sm:$0xff]
    %v156 = vld [vmem:[#allocation10 + $0x198] sm:$0xff]
    %v157 = vld [vmem:[#allocation10 + $0x1a0] sm:$0xff]
    %v158 = vld [vmem:[#allocation10 + $0x1a8] sm:$0xff]
    %v159 = vld [vmem:[#allocation10 + $0x1b0] sm:$0xff]
    %v160 = vld [vmem:[#allocation10 + $0x1b8] sm:$0xff]
    %v161 = vld [vmem:[#allocation10 + $0x1c0] sm:$0xff]
    %v162 = vld [vmem:[#allocation10 + $0x1c8] sm:$0xff]
    %v163 = vld [vmem:[#allocation10 + $0x1d0] sm:$0xff]
    %v164 = vld [vmem:[#allocation10 + $0x1d8] sm:$0xff]
    %v165 = vld [vmem:[#allocation10 + $0x1e0] sm:$0xff]
    %v166 = vld [vmem:[#allocation10 + $0x1e8] sm:$0xff]
    %v167 = vld [vmem:[#allocation10 + $0x1f0] sm:$0xff]
    %v168 = vld [vmem:[#allocation10 + $0x1f8] sm:$0xff]
    %v169 = vld [vmem:[#allocation2] sm:$0xff]
    %v170 = vld [vmem:[#allocation3] sm:$0xff]
    %172 = vset.pattern.permute.xlu0 0
    %173 = vperm.xlu0 %172, %v102
    %v174 = vpop.permute.xlu0 %173
    %v177 = vperm.slane %v103, 0
    %v178 = vperm.slane %v103, 1
    %v179 = vperm.slane %v103, 2
    %v180 = vperm.slane %v103, 3
    %v185 = vmul.f32 %v174, %v177
    %v186 = vmul.f32 %v174, %v178
    %v187 = vmul.f32 %v174, %v179
    %v188 = vmul.f32 %v174, %v180
    %v190 = vperm.slane %v104, 0
    %v191 = vperm.slane %v104, 1
    %v192 = vperm.slane %v104, 2
    %v193 = vperm.slane %v104, 3
    %v198 = vadd.f32 %v185, %v190
    %v199 = vadd.f32 %v186, %v191
    %v200 = vadd.f32 %v187, %v192
    %v201 = vadd.f32 %v188, %v193
    %202 = vmatpush.msra.mxu0 %v165
    %203 = vmatpush.msra.mxu0 %v161
    %204 = vmatpush.msra.mxu0 %v157
    %205 = vmatpush.msra.mxu0 %v153
    %206 = vmatpush.msra.mxu0 %v149
    %207 = vmatpush.msra.mxu0 %v145
    %208 = vmatpush.msra.mxu0 %v141
    %209 = vmatpush.msra.mxu0 %v137
    %210 = vmatpush.msra.mxu0 %v133
    %211 = vmatpush.msra.mxu0 %v129
    %212 = vmatpush.msra.mxu0 %v125
    %213 = vmatpush.msra.mxu0 %v121
    %214 = vmatpush.msra.mxu0 %v117
    %215 = vmatpush.msra.mxu0 %v113
    %216 = vmatpush.msra.mxu0 %v109
    %217 = vmatpush.msra.mxu0 %v105
    %218 = vmatmul.f32.gmra.mxu0 %v169
    %v219 = vpop.f32.mrf.mxu0
    %v220 = vadd.f32 0.0, %v219
    %221 = vdwg.mxu0
    %222 = vmatpush.msra.mxu0 %v166
    %223 = vmatpush.msra.mxu0 %v162
    %224 = vmatpush.msra.mxu0 %v158
    %225 = vmatpush.msra.mxu0 %v154
    %226 = vmatpush.msra.mxu0 %v150
    %227 = vmatpush.msra.mxu0 %v146
    %228 = vmatpush.msra.mxu0 %v142
    %229 = vmatpush.msra.mxu0 %v138
    %230 = vmatpush.msra.mxu0 %v134
    %231 = vmatpush.msra.mxu0 %v130
    %232 = vmatpush.msra.mxu0 %v126
    %233 = vmatpush.msra.mxu0 %v122
    %234 = vmatpush.msra.mxu0 %v118
    %235 = vmatpush.msra.mxu0 %v114
    %236 = vmatpush.msra.mxu0 %v110
    %237 = vmatpush.msra.mxu0 %v106
    %238 = vmatmul.f32.gmra.mxu0 %v169
    %v239 = vpop.f32.mrf.mxu0
    %v240 = vadd.f32 0.0, %v239
    %241 = vdwg.mxu0
    %242 = vmatpush.msra.mxu0 %v167
    %243 = vmatpush.msra.mxu0 %v163
    %244 = vmatpush.msra.mxu0 %v159
    %245 = vmatpush.msra.mxu0 %v155
    %246 = vmatpush.msra.mxu0 %v151
    %247 = vmatpush.msra.mxu0 %v147
    %248 = vmatpush.msra.mxu0 %v143
    %249 = vmatpush.msra.mxu0 %v139
    %250 = vmatpush.msra.mxu0 %v135
    %251 = vmatpush.msra.mxu0 %v131
    %252 = vmatpush.msra.mxu0 %v127
    %253 = vmatpush.msra.mxu0 %v123
    %254 = vmatpush.msra.mxu0 %v119
    %255 = vmatpush.msra.mxu0 %v115
    %256 = vmatpush.msra.mxu0 %v111
    %257 = vmatpush.msra.mxu0 %v107
    %258 = vmatmul.f32.gmra.mxu0 %v169
    %v259 = vpop.f32.mrf.mxu0
    %v260 = vadd.f32 0.0, %v259
    %261 = vdwg.mxu0
    %262 = vmatpush.msra.mxu0 %v168
    %263 = vmatpush.msra.mxu0 %v164
    %264 = vmatpush.msra.mxu0 %v160
    %265 = vmatpush.msra.mxu0 %v156
    %266 = vmatpush.msra.mxu0 %v152
    %267 = vmatpush.msra.mxu0 %v148
    %268 = vmatpush.msra.mxu0 %v144
    %269 = vmatpush.msra.mxu0 %v140
    %270 = vmatpush.msra.mxu0 %v136
    %271 = vmatpush.msra.mxu0 %v132
    %272 = vmatpush.msra.mxu0 %v128
    %273 = vmatpush.msra.mxu0 %v124
    %274 = vmatpush.msra.mxu0 %v120
    %275 = vmatpush.msra.mxu0 %v116
    %276 = vmatpush.msra.mxu0 %v112
    %277 = vmatpush.msra.mxu0 %v108
    %278 = vmatmul.f32.gmra.mxu0 %v169
    %v279 = vpop.f32.mrf.mxu0
    %v280 = vadd.f32 0.0, %v279
    %281 = vdwg.mxu0
    %v282 = vadd.f32 %v198, %v220
    %v283 = vadd.f32 %v199, %v240
    %v284 = vadd.f32 %v200, %v260
    %v285 = vadd.f32 %v201, %v280
    %v286 = vxor.u32 %v282, 2147483648
    %v287 = vmul.f32 %v286, 1.442695
    %v288 = vpow.pop %v287
    %v289 = vadd.f32 %v288, 1.0
    %v290 = vrcp.pop %v289
    %v291 = vmul.f32 %v289, %v290
    %v292 = vsub.f32 1.0, %v291
    %v293 = vmul.f32 %v290, %v292
    %v294 = vadd.f32 %v290, %v293
    %vm295 = vweird.f32 %v289
    %vm296 = vweird.f32 %v290
    %vm297 = vmor %vm295, %vm296
    %v298 = vsel %vm297, %v290, %v294
    %v299 = vand.u32 2147483647, %v289
    %vm300 = vcmp.eq.f32.partialorder %v299, 8.507059e+37
    %v301 = vand.u32 %v289, 2147483648
    %v302 = vor.u32 1.1754944e-38, %v301
    %v303 = vsel %vm300, %v302, %v298
    %v304 = vmul.f32 1.0, %v303
    %v305 = vxor.u32 %v283, 2147483648
    %v306 = vmul.f32 %v305, 1.442695
    %v307 = vpow.pop %v306
    %v308 = vadd.f32 %v307, 1.0
    %v309 = vrcp.pop %v308
    %v310 = vmul.f32 %v308, %v309
    %v311 = vsub.f32 1.0, %v310
    %v312 = vmul.f32 %v309, %v311
    %v313 = vadd.f32 %v309, %v312
    %vm314 = vweird.f32 %v308
    %vm315 = vweird.f32 %v309
    %vm316 = vmor %vm314, %vm315
    %v317 = vsel %vm316, %v309, %v313
    %v318 = vand.u32 2147483647, %v308
    %vm319 = vcmp.eq.f32.partialorder %v318, 8.507059e+37
    %v320 = vand.u32 %v308, 2147483648
    %v321 = vor.u32 1.1754944e-38, %v320
    %v322 = vsel %vm319, %v321, %v317
    %v323 = vmul.f32 1.0, %v322
    %v324 = vtanh.pop %v284
    %v325 = vxor.u32 %v285, 2147483648
    %v326 = vmul.f32 %v325, 1.442695
    %v327 = vpow.pop %v326
    %v328 = vadd.f32 %v327, 1.0
    %v329 = vrcp.pop %v328
    %v330 = vmul.f32 %v328, %v329
    %v331 = vsub.f32 1.0, %v330
    %v332 = vmul.f32 %v329, %v331
    %v333 = vadd.f32 %v329, %v332
    %vm334 = vweird.f32 %v328
    %vm335 = vweird.f32 %v329
    %vm336 = vmor %vm334, %vm335
    %v337 = vsel %vm336, %v329, %v333
    %v338 = vand.u32 2147483647, %v328
    %vm339 = vcmp.eq.f32.partialorder %v338, 8.507059e+37
    %v340 = vand.u32 %v328, 2147483648
    %v341 = vor.u32 1.1754944e-38, %v340
    %v342 = vsel %vm339, %v341, %v337
    %v343 = vmul.f32 1.0, %v342
    %v344 = vmul.f32 %v323, %v170
    %v345 = vmul.f32 %v304, %v324
    %v346 = vadd.f32 %v344, %v345
    %v347 = vtanh.pop %v346
    %v348 = vmul.f32 %v343, %v347
    %349 = vset.pattern.permute.xlu0 1
    %350 = vperm.xlu0 %349, %v102
    %v351 = vpop.permute.xlu0 %350
    %v353 = vmul.f32 %v351, %v177
    %v354 = vmul.f32 %v351, %v178
    %v355 = vmul.f32 %v351, %v179
    %v356 = vmul.f32 %v351, %v180
    %v357 = vadd.f32 %v353, %v190
    %v358 = vadd.f32 %v354, %v191
    %v359 = vadd.f32 %v355, %v192
    %v360 = vadd.f32 %v356, %v193
    %361 = vmatpush.msra.mxu0 %v165
    %362 = vmatpush.msra.mxu0 %v161
    %363 = vmatpush.msra.mxu0 %v157
    %364 = vmatpush.msra.mxu0 %v153
    %365 = vmatpush.msra.mxu0 %v149
    %366 = vmatpush.msra.mxu0 %v145
    %367 = vmatpush.msra.mxu0 %v141
    %368 = vmatpush.msra.mxu0 %v137
    %369 = vmatpush.msra.mxu0 %v133
    %370 = vmatpush.msra.mxu0 %v129
    %371 = vmatpush.msra.mxu0 %v125
    %372 = vmatpush.msra.mxu0 %v121
    %373 = vmatpush.msra.mxu0 %v117
    %374 = vmatpush.msra.mxu0 %v113
    %375 = vmatpush.msra.mxu0 %v109
    %376 = vmatpush.msra.mxu0 %v105
    %377 = vmatmul.f32.gmra.mxu0 %v348
    %v378 = vpop.f32.mrf.mxu0
    %v379 = vadd.f32 0.0, %v378
    %380 = vdwg.mxu0
    %381 = vmatpush.msra.mxu0 %v166
    %382 = vmatpush.msra.mxu0 %v162
    %383 = vmatpush.msra.mxu0 %v158
    %384 = vmatpush.msra.mxu0 %v154
    %385 = vmatpush.msra.mxu0 %v150
    %386 = vmatpush.msra.mxu0 %v146
    %387 = vmatpush.msra.mxu0 %v142
    %388 = vmatpush.msra.mxu0 %v138
    %389 = vmatpush.msra.mxu0 %v134
    %390 = vmatpush.msra.mxu0 %v130
    %391 = vmatpush.msra.mxu0 %v126
    %392 = vmatpush.msra.mxu0 %v122
    %393 = vmatpush.msra.mxu0 %v118
    %394 = vmatpush.msra.mxu0 %v114
    %395 = vmatpush.msra.mxu0 %v110
    %396 = vmatpush.msra.mxu0 %v106
    %397 = vmatmul.f32.gmra.mxu0 %v348
    %v398 = vpop.f32.mrf.mxu0
    %v399 = vadd.f32 0.0, %v398
    %400 = vdwg.mxu0
    %401 = vmatpush.msra.mxu0 %v167
    %402 = vmatpush.msra.mxu0 %v163
    %403 = vmatpush.msra.mxu0 %v159
    %404 = vmatpush.msra.mxu0 %v155
    %405 = vmatpush.msra.mxu0 %v151
    %406 = vmatpush.msra.mxu0 %v147
    %407 = vmatpush.msra.mxu0 %v143
    %408 = vmatpush.msra.mxu0 %v139
    %409 = vmatpush.msra.mxu0 %v135
    %410 = vmatpush.msra.mxu0 %v131
    %411 = vmatpush.msra.mxu0 %v127
    %412 = vmatpush.msra.mxu0 %v123
    %413 = vmatpush.msra.mxu0 %v119
    %414 = vmatpush.msra.mxu0 %v115
    %415 = vmatpush.msra.mxu0 %v111
    %416 = vmatpush.msra.mxu0 %v107
    %417 = vmatmul.f32.gmra.mxu0 %v348
    %v418 = vpop.f32.mrf.mxu0
    %v419 = vadd.f32 0.0, %v418
    %420 = vdwg.mxu0
    %421 = vmatpush.msra.mxu0 %v168
    %422 = vmatpush.msra.mxu0 %v164
    %423 = vmatpush.msra.mxu0 %v160
    %424 = vmatpush.msra.mxu0 %v156
    %425 = vmatpush.msra.mxu0 %v152
    %426 = vmatpush.msra.mxu0 %v148
    %427 = vmatpush.msra.mxu0 %v144
    %428 = vmatpush.msra.mxu0 %v140
    %429 = vmatpush.msra.mxu0 %v136
    %430 = vmatpush.msra.mxu0 %v132
    %431 = vmatpush.msra.mxu0 %v128
    %432 = vmatpush.msra.mxu0 %v124
    %433 = vmatpush.msra.mxu0 %v120
    %434 = vmatpush.msra.mxu0 %v116
    %435 = vmatpush.msra.mxu0 %v112
    %436 = vmatpush.msra.mxu0 %v108
    %437 = vmatmul.f32.gmra.mxu0 %v348
    %v438 = vpop.f32.mrf.mxu0
    %v439 = vadd.f32 0.0, %v438
    %440 = vdwg.mxu0
    %v441 = vadd.f32 %v357, %v379
    %v442 = vadd.f32 %v358, %v399
    %v443 = vadd.f32 %v359, %v419
    %v444 = vadd.f32 %v360, %v439
    %v445 = vxor.u32 %v441, 2147483648
    %v446 = vmul.f32 %v445, 1.442695
    %v447 = vpow.pop %v446
    %v448 = vadd.f32 %v447, 1.0
    %v449 = vrcp.pop %v448
    %v450 = vmul.f32 %v448, %v449
    %v451 = vsub.f32 1.0, %v450
    %v452 = vmul.f32 %v449, %v451
    %v453 = vadd.f32 %v449, %v452
    %vm454 = vweird.f32 %v448
    %vm455 = vweird.f32 %v449
    %vm456 = vmor %vm454, %vm455
    %v457 = vsel %vm456, %v449, %v453
    %v458 = vand.u32 2147483647, %v448
    %vm459 = vcmp.eq.f32.partialorder %v458, 8.507059e+37
    %v460 = vand.u32 %v448, 2147483648
    %v461 = vor.u32 1.1754944e-38, %v460
    %v462 = vsel %vm459, %v461, %v457
    %v463 = vmul.f32 1.0, %v462
    %v464 = vxor.u32 %v442, 2147483648
    %v465 = vmul.f32 %v464, 1.442695
    %v466 = vpow.pop %v465
    %v467 = vadd.f32 %v466, 1.0
    %v468 = vrcp.pop %v467
    %v469 = vmul.f32 %v467, %v468
    %v470 = vsub.f32 1.0, %v469
    %v471 = vmul.f32 %v468, %v470
    %v472 = vadd.f32 %v468, %v471
    %vm473 = vweird.f32 %v467
    %vm474 = vweird.f32 %v468
    %vm475 = vmor %vm473, %vm474
    %v476 = vsel %vm475, %v468, %v472
    %v477 = vand.u32 2147483647, %v467
    %vm478 = vcmp.eq.f32.partialorder %v477, 8.507059e+37
    %v479 = vand.u32 %v467, 2147483648
    %v480 = vor.u32 1.1754944e-38, %v479
    %v481 = vsel %vm478, %v480, %v476
    %v482 = vmul.f32 1.0, %v481
    %v483 = vtanh.pop %v443
    %v484 = vxor.u32 %v444, 2147483648
    %v485 = vmul.f32 %v484, 1.442695
    %v486 = vpow.pop %v485
    %v487 = vadd.f32 %v486, 1.0
    %v488 = vrcp.pop %v487
    %v489 = vmul.f32 %v487, %v488
    %v490 = vsub.f32 1.0, %v489
    %v491 = vmul.f32 %v488, %v490
    %v492 = vadd.f32 %v488, %v491
    %vm493 = vweird.f32 %v487
    %vm494 = vweird.f32 %v488
    %vm495 = vmor %vm493, %vm494
    %v496 = vsel %vm495, %v488, %v492
    %v497 = vand.u32 2147483647, %v487
    %vm498 = vcmp.eq.f32.partialorder %v497, 8.507059e+37
    %v499 = vand.u32 %v487, 2147483648
    %v500 = vor.u32 1.1754944e-38, %v499
    %v501 = vsel %vm498, %v500, %v496
    %v502 = vmul.f32 1.0, %v501
    %v503 = vmul.f32 %v482, %v346
    %v504 = vmul.f32 %v463, %v483
    %v505 = vadd.f32 %v503, %v504
    %v506 = vtanh.pop %v505
    %v507 = vmul.f32 %v502, %v506
    %508 = vset.pattern.permute.xlu0 2
    %509 = vperm.xlu0 %508, %v102
    %v510 = vpop.permute.xlu0 %509
    %v512 = vmul.f32 %v510, %v177
    %v513 = vmul.f32 %v510, %v178
    %v514 = vmul.f32 %v510, %v179
    %v515 = vmul.f32 %v510, %v180
    %v516 = vadd.f32 %v512, %v190
    %v517 = vadd.f32 %v513, %v191
    %v518 = vadd.f32 %v514, %v192
    %v519 = vadd.f32 %v515, %v193
    %520 = vmatpush.msra.mxu0 %v165
    %521 = vmatpush.msra.mxu0 %v161
    %522 = vmatpush.msra.mxu0 %v157
    %523 = vmatpush.msra.mxu0 %v153
    %524 = vmatpush.msra.mxu0 %v149
    %525 = vmatpush.msra.mxu0 %v145
    %526 = vmatpush.msra.mxu0 %v141
    %527 = vmatpush.msra.mxu0 %v137
    %528 = vmatpush.msra.mxu0 %v133
    %529 = vmatpush.msra.mxu0 %v129
    %530 = vmatpush.msra.mxu0 %v125
    %531 = vmatpush.msra.mxu0 %v121
    %532 = vmatpush.msra.mxu0 %v117
    %533 = vmatpush.msra.mxu0 %v113
    %534 = vmatpush.msra.mxu0 %v109
    %535 = vmatpush.msra.mxu0 %v105
    %536 = vmatmul.f32.gmra.mxu0 %v507
    %v537 = vpop.f32.mrf.mxu0
    %v538 = vadd.f32 0.0, %v537
    %539 = vdwg.mxu0
    %540 = vmatpush.msra.mxu0 %v166
    %541 = vmatpush.msra.mxu0 %v162
    %542 = vmatpush.msra.mxu0 %v158
    %543 = vmatpush.msra.mxu0 %v154
    %544 = vmatpush.msra.mxu0 %v150
    %545 = vmatpush.msra.mxu0 %v146
    %546 = vmatpush.msra.mxu0 %v142
    %547 = vmatpush.msra.mxu0 %v138
    %548 = vmatpush.msra.mxu0 %v134
    %549 = vmatpush.msra.mxu0 %v130
    %550 = vmatpush.msra.mxu0 %v126
    %551 = vmatpush.msra.mxu0 %v122
    %552 = vmatpush.msra.mxu0 %v118
    %553 = vmatpush.msra.mxu0 %v114
    %554 = vmatpush.msra.mxu0 %v110
    %555 = vmatpush.msra.mxu0 %v106
    %556 = vmatmul.f32.gmra.mxu0 %v507
    %v557 = vpop.f32.mrf.mxu0
    %v558 = vadd.f32 0.0, %v557
    %559 = vdwg.mxu0
    %560 = vmatpush.msra.mxu0 %v167
    %561 = vmatpush.msra.mxu0 %v163
    %562 = vmatpush.msra.mxu0 %v159
    %563 = vmatpush.msra.mxu0 %v155
    %564 = vmatpush.msra.mxu0 %v151
    %565 = vmatpush.msra.mxu0 %v147
    %566 = vmatpush.msra.mxu0 %v143
    %567 = vmatpush.msra.mxu0 %v139
    %568 = vmatpush.msra.mxu0 %v135
    %569 = vmatpush.msra.mxu0 %v131
    %570 = vmatpush.msra.mxu0 %v127
    %571 = vmatpush.msra.mxu0 %v123
    %572 = vmatpush.msra.mxu0 %v119
    %573 = vmatpush.msra.mxu0 %v115
    %574 = vmatpush.msra.mxu0 %v111
    %575 = vmatpush.msra.mxu0 %v107
    %576 = vmatmul.f32.gmra.mxu0 %v507
    %v577 = vpop.f32.mrf.mxu0
    %v578 = vadd.f32 0.0, %v577
    %579 = vdwg.mxu0
    %580 = vmatpush.msra.mxu0 %v168
    %581 = vmatpush.msra.mxu0 %v164
    %582 = vmatpush.msra.mxu0 %v160
    %583 = vmatpush.msra.mxu0 %v156
    %584 = vmatpush.msra.mxu0 %v152
    %585 = vmatpush.msra.mxu0 %v148
    %586 = vmatpush.msra.mxu0 %v144
    %587 = vmatpush.msra.mxu0 %v140
    %588 = vmatpush.msra.mxu0 %v136
    %589 = vmatpush.msra.mxu0 %v132
    %590 = vmatpush.msra.mxu0 %v128
    %591 = vmatpush.msra.mxu0 %v124
    %592 = vmatpush.msra.mxu0 %v120
    %593 = vmatpush.msra.mxu0 %v116
    %594 = vmatpush.msra.mxu0 %v112
    %595 = vmatpush.msra.mxu0 %v108
    %596 = vmatmul.f32.gmra.mxu0 %v507
    %v597 = vpop.f32.mrf.mxu0
    %v598 = vadd.f32 0.0, %v597
    %599 = vdwg.mxu0
    %v600 = vadd.f32 %v516, %v538
    %v601 = vadd.f32 %v517, %v558
    %v602 = vadd.f32 %v518, %v578
    %v603 = vadd.f32 %v519, %v598
    %v604 = vxor.u32 %v600, 2147483648
    %v605 = vmul.f32 %v604, 1.442695
    %v606 = vpow.pop %v605
    %v607 = vadd.f32 %v606, 1.0
    %v608 = vrcp.pop %v607
    %v609 = vmul.f32 %v607, %v608
    %v610 = vsub.f32 1.0, %v609
    %v611 = vmul.f32 %v608, %v610
    %v612 = vadd.f32 %v608, %v611
    %vm613 = vweird.f32 %v607
    %vm614 = vweird.f32 %v608
    %vm615 = vmor %vm613, %vm614
    %v616 = vsel %vm615, %v608, %v612
    %v617 = vand.u32 2147483647, %v607
    %vm618 = vcmp.eq.f32.partialorder %v617, 8.507059e+37
    %v619 = vand.u32 %v607, 2147483648
    %v620 = vor.u32 1.1754944e-38, %v619
    %v621 = vsel %vm618, %v620, %v616
    %v622 = vmul.f32 1.0, %v621
    %v623 = vxor.u32 %v601, 2147483648
    %v624 = vmul.f32 %v623, 1.442695
    %v625 = vpow.pop %v624
    %v626 = vadd.f32 %v625, 1.0
    %v627 = vrcp.pop %v626
    %v628 = vmul.f32 %v626, %v627
    %v629 = vsub.f32 1.0, %v628
    %v630 = vmul.f32 %v627, %v629
    %v631 = vadd.f32 %v627, %v630
    %vm632 = vweird.f32 %v626
    %vm633 = vweird.f32 %v627
    %vm634 = vmor %vm632, %vm633
    %v635 = vsel %vm634, %v627, %v631
    %v636 = vand.u32 2147483647, %v626
    %vm637 = vcmp.eq.f32.partialorder %v636, 8.507059e+37
    %v638 = vand.u32 %v626, 2147483648
    %v639 = vor.u32 1.1754944e-38, %v638
    %v640 = vsel %vm637, %v639, %v635
    %v641 = vmul.f32 1.0, %v640
    %v642 = vtanh.pop %v602
    %v643 = vxor.u32 %v603, 2147483648
    %v644 = vmul.f32 %v643, 1.442695
    %v645 = vpow.pop %v644
    %v646 = vadd.f32 %v645, 1.0
    %v647 = vrcp.pop %v646
    %v648 = vmul.f32 %v646, %v647
    %v649 = vsub.f32 1.0, %v648
    %v650 = vmul.f32 %v647, %v649
    %v651 = vadd.f32 %v647, %v650
    %vm652 = vweird.f32 %v646
    %vm653 = vweird.f32 %v647
    %vm654 = vmor %vm652, %vm653
    %v655 = vsel %vm654, %v647, %v651
    %v656 = vand.u32 2147483647, %v646
    %vm657 = vcmp.eq.f32.partialorder %v656, 8.507059e+37
    %v658 = vand.u32 %v646, 2147483648
    %v659 = vor.u32 1.1754944e-38, %v658
    %v660 = vsel %vm657, %v659, %v655
    %v661 = vmul.f32 1.0, %v660
    %v662 = vmul.f32 %v641, %v505
    %v663 = vmul.f32 %v622, %v642
    %v664 = vadd.f32 %v662, %v663
    %v665 = vtanh.pop %v664
    %v666 = vmul.f32 %v661, %v665
    %667 = vset.pattern.permute.xlu0 3
    %668 = vperm.xlu0 %667, %v102
    %v669 = vpop.permute.xlu0 %668
    %v671 = vmul.f32 %v669, %v177
    %v672 = vmul.f32 %v669, %v178
    %v673 = vmul.f32 %v669, %v179
    %v674 = vmul.f32 %v669, %v180
    %v675 = vadd.f32 %v671, %v190
    %v676 = vadd.f32 %v672, %v191
    %v677 = vadd.f32 %v673, %v192
    %v678 = vadd.f32 %v674, %v193
    %679 = vmatpush.msra.mxu0 %v165
    %680 = vmatpush.msra.mxu0 %v161
    %681 = vmatpush.msra.mxu0 %v157
    %682 = vmatpush.msra.mxu0 %v153
    %683 = vmatpush.msra.mxu0 %v149
    %684 = vmatpush.msra.mxu0 %v145
    %685 = vmatpush.msra.mxu0 %v141
    %686 = vmatpush.msra.mxu0 %v137
    %687 = vmatpush.msra.mxu0 %v133
    %688 = vmatpush.msra.mxu0 %v129
    %689 = vmatpush.msra.mxu0 %v125
    %690 = vmatpush.msra.mxu0 %v121
    %691 = vmatpush.msra.mxu0 %v117
    %692 = vmatpush.msra.mxu0 %v113
    %693 = vmatpush.msra.mxu0 %v109
    %694 = vmatpush.msra.mxu0 %v105
    %695 = vmatmul.f32.gmra.mxu0 %v666
    %v696 = vpop.f32.mrf.mxu0
    %v697 = vadd.f32 0.0, %v696
    %698 = vdwg.mxu0
    %699 = vmatpush.msra.mxu0 %v166
    %700 = vmatpush.msra.mxu0 %v162
    %701 = vmatpush.msra.mxu0 %v158
    %702 = vmatpush.msra.mxu0 %v154
    %703 = vmatpush.msra.mxu0 %v150
    %704 = vmatpush.msra.mxu0 %v146
    %705 = vmatpush.msra.mxu0 %v142
    %706 = vmatpush.msra.mxu0 %v138
    %707 = vmatpush.msra.mxu0 %v134
    %708 = vmatpush.msra.mxu0 %v130
    %709 = vmatpush.msra.mxu0 %v126
    %710 = vmatpush.msra.mxu0 %v122
    %711 = vmatpush.msra.mxu0 %v118
    %712 = vmatpush.msra.mxu0 %v114
    %713 = vmatpush.msra.mxu0 %v110
    %714 = vmatpush.msra.mxu0 %v106
    %715 = vmatmul.f32.gmra.mxu0 %v666
    %v716 = vpop.f32.mrf.mxu0
    %v717 = vadd.f32 0.0, %v716
    %718 = vdwg.mxu0
    %719 = vmatpush.msra.mxu0 %v167
    %720 = vmatpush.msra.mxu0 %v163
    %721 = vmatpush.msra.mxu0 %v159
    %722 = vmatpush.msra.mxu0 %v155
    %723 = vmatpush.msra.mxu0 %v151
    %724 = vmatpush.msra.mxu0 %v147
    %725 = vmatpush.msra.mxu0 %v143
    %726 = vmatpush.msra.mxu0 %v139
    %727 = vmatpush.msra.mxu0 %v135
    %728 = vmatpush.msra.mxu0 %v131
    %729 = vmatpush.msra.mxu0 %v127
    %730 = vmatpush.msra.mxu0 %v123
    %731 = vmatpush.msra.mxu0 %v119
    %732 = vmatpush.msra.mxu0 %v115
    %733 = vmatpush.msra.mxu0 %v111
    %734 = vmatpush.msra.mxu0 %v107
    %735 = vmatmul.f32.gmra.mxu0 %v666
    %v736 = vpop.f32.mrf.mxu0
    %v737 = vadd.f32 0.0, %v736
    %738 = vdwg.mxu0
    %739 = vmatpush.msra.mxu0 %v168
    %740 = vmatpush.msra.mxu0 %v164
    %741 = vmatpush.msra.mxu0 %v160
    %742 = vmatpush.msra.mxu0 %v156
    %743 = vmatpush.msra.mxu0 %v152
    %744 = vmatpush.msra.mxu0 %v148
    %745 = vmatpush.msra.mxu0 %v144
    %746 = vmatpush.msra.mxu0 %v140
    %747 = vmatpush.msra.mxu0 %v136
    %748 = vmatpush.msra.mxu0 %v132
    %749 = vmatpush.msra.mxu0 %v128
    %750 = vmatpush.msra.mxu0 %v124
    %751 = vmatpush.msra.mxu0 %v120
    %752 = vmatpush.msra.mxu0 %v116
    %753 = vmatpush.msra.mxu0 %v112
    %754 = vmatpush.msra.mxu0 %v108
    %755 = vmatmul.f32.gmra.mxu0 %v666
    %v756 = vpop.f32.mrf.mxu0
    %v757 = vadd.f32 0.0, %v756
    %758 = vdwg.mxu0
    %v759 = vadd.f32 %v675, %v697
    %v760 = vadd.f32 %v676, %v717
    %v761 = vadd.f32 %v677, %v737
    %v762 = vadd.f32 %v678, %v757
    %v763 = vxor.u32 %v759, 2147483648
    %v764 = vmul.f32 %v763, 1.442695
    %v765 = vpow.pop %v764
    %v766 = vadd.f32 %v765, 1.0
    %v767 = vrcp.pop %v766
    %v768 = vmul.f32 %v766, %v767
    %v769 = vsub.f32 1.0, %v768
    %v770 = vmul.f32 %v767, %v769
    %v771 = vadd.f32 %v767, %v770
    %vm772 = vweird.f32 %v766
    %vm773 = vweird.f32 %v767
    %vm774 = vmor %vm772, %vm773
    %v775 = vsel %vm774, %v767, %v771
    %v776 = vand.u32 2147483647, %v766
    %vm777 = vcmp.eq.f32.partialorder %v776, 8.507059e+37
    %v778 = vand.u32 %v766, 2147483648
    %v779 = vor.u32 1.1754944e-38, %v778
    %v780 = vsel %vm777, %v779, %v775
    %v781 = vmul.f32 1.0, %v780
    %v782 = vxor.u32 %v760, 2147483648
    %v783 = vmul.f32 %v782, 1.442695
    %v784 = vpow.pop %v783
    %v785 = vadd.f32 %v784, 1.0
    %v786 = vrcp.pop %v785
    %v787 = vmul.f32 %v785, %v786
    %v788 = vsub.f32 1.0, %v787
    %v789 = vmul.f32 %v786, %v788
    %v790 = vadd.f32 %v786, %v789
    %vm791 = vweird.f32 %v785
    %vm792 = vweird.f32 %v786
    %vm793 = vmor %vm791, %vm792
    %v794 = vsel %vm793, %v786, %v790
    %v795 = vand.u32 2147483647, %v785
    %vm796 = vcmp.eq.f32.partialorder %v795, 8.507059e+37
    %v797 = vand.u32 %v785, 2147483648
    %v798 = vor.u32 1.1754944e-38, %v797
    %v799 = vsel %vm796, %v798, %v794
    %v800 = vmul.f32 1.0, %v799
    %v801 = vtanh.pop %v761
    %v802 = vxor.u32 %v762, 2147483648
    %v803 = vmul.f32 %v802, 1.442695
    %v804 = vpow.pop %v803
    %v805 = vadd.f32 %v804, 1.0
    %v806 = vrcp.pop %v805
    %v807 = vmul.f32 %v805, %v806
    %v808 = vsub.f32 1.0, %v807
    %v809 = vmul.f32 %v806, %v808
    %v810 = vadd.f32 %v806, %v809
    %vm811 = vweird.f32 %v805
    %vm812 = vweird.f32 %v806
    %vm813 = vmor %vm811, %vm812
    %v814 = vsel %vm813, %v806, %v810
    %v815 = vand.u32 2147483647, %v805
    %vm816 = vcmp.eq.f32.partialorder %v815, 8.507059e+37
    %v817 = vand.u32 %v805, 2147483648
    %v818 = vor.u32 1.1754944e-38, %v817
    %v819 = vsel %vm816, %v818, %v814
    %v820 = vmul.f32 1.0, %v819
    %v821 = vmul.f32 %v800, %v664
    %v822 = vmul.f32 %v781, %v801
    %v823 = vadd.f32 %v821, %v822
    %v824 = vtanh.pop %v823
    %v825 = vmul.f32 %v820, %v824
    %826 = vset.pattern.permute.xlu0 4
    %827 = vperm.xlu0 %826, %v102
    %v828 = vpop.permute.xlu0 %827
    %v830 = vmul.f32 %v828, %v177
    %v831 = vmul.f32 %v828, %v178
    %v832 = vmul.f32 %v828, %v179
    %v833 = vmul.f32 %v828, %v180
    %v834 = vadd.f32 %v830, %v190
    %v835 = vadd.f32 %v831, %v191
    %v836 = vadd.f32 %v832, %v192
    %v837 = vadd.f32 %v833, %v193
    %838 = vmatpush.msra.mxu0 %v165
    %839 = vmatpush.msra.mxu0 %v161
    %840 = vmatpush.msra.mxu0 %v157
    %841 = vmatpush.msra.mxu0 %v153
    %842 = vmatpush.msra.mxu0 %v149
    %843 = vmatpush.msra.mxu0 %v145
    %844 = vmatpush.msra.mxu0 %v141
    %845 = vmatpush.msra.mxu0 %v137
    %846 = vmatpush.msra.mxu0 %v133
    %847 = vmatpush.msra.mxu0 %v129
    %848 = vmatpush.msra.mxu0 %v125
    %849 = vmatpush.msra.mxu0 %v121
    %850 = vmatpush.msra.mxu0 %v117
    %851 = vmatpush.msra.mxu0 %v113
    %852 = vmatpush.msra.mxu0 %v109
    %853 = vmatpush.msra.mxu0 %v105
    %854 = vmatmul.f32.gmra.mxu0 %v825
    %v855 = vpop.f32.mrf.mxu0
    %v856 = vadd.f32 0.0, %v855
    %857 = vdwg.mxu0
    %858 = vmatpush.msra.mxu0 %v166
    %859 = vmatpush.msra.mxu0 %v162
    %860 = vmatpush.msra.mxu0 %v158
    %861 = vmatpush.msra.mxu0 %v154
    %862 = vmatpush.msra.mxu0 %v150
    %863 = vmatpush.msra.mxu0 %v146
    %864 = vmatpush.msra.mxu0 %v142
    %865 = vmatpush.msra.mxu0 %v138
    %866 = vmatpush.msra.mxu0 %v134
    %867 = vmatpush.msra.mxu0 %v130
    %868 = vmatpush.msra.mxu0 %v126
    %869 = vmatpush.msra.mxu0 %v122
    %870 = vmatpush.msra.mxu0 %v118
    %871 = vmatpush.msra.mxu0 %v114
    %872 = vmatpush.msra.mxu0 %v110
    %873 = vmatpush.msra.mxu0 %v106
    %874 = vmatmul.f32.gmra.mxu0 %v825
    %v875 = vpop.f32.mrf.mxu0
    %v876 = vadd.f32 0.0, %v875
    %877 = vdwg.mxu0
    %878 = vmatpush.msra.mxu0 %v167
    %879 = vmatpush.msra.mxu0 %v163
    %880 = vmatpush.msra.mxu0 %v159
    %881 = vmatpush.msra.mxu0 %v155
    %882 = vmatpush.msra.mxu0 %v151
    %883 = vmatpush.msra.mxu0 %v147
    %884 = vmatpush.msra.mxu0 %v143
    %885 = vmatpush.msra.mxu0 %v139
    %886 = vmatpush.msra.mxu0 %v135
    %887 = vmatpush.msra.mxu0 %v131
    %888 = vmatpush.msra.mxu0 %v127
    %889 = vmatpush.msra.mxu0 %v123
    %890 = vmatpush.msra.mxu0 %v119
    %891 = vmatpush.msra.mxu0 %v115
    %892 = vmatpush.msra.mxu0 %v111
    %893 = vmatpush.msra.mxu0 %v107
    %894 = vmatmul.f32.gmra.mxu0 %v825
    %v895 = vpop.f32.mrf.mxu0
    %v896 = vadd.f32 0.0, %v895
    %897 = vdwg.mxu0
    %898 = vmatpush.msra.mxu0 %v168
    %899 = vmatpush.msra.mxu0 %v164
    %900 = vmatpush.msra.mxu0 %v160
    %901 = vmatpush.msra.mxu0 %v156
    %902 = vmatpush.msra.mxu0 %v152
    %903 = vmatpush.msra.mxu0 %v148
    %904 = vmatpush.msra.mxu0 %v144
    %905 = vmatpush.msra.mxu0 %v140
    %906 = vmatpush.msra.mxu0 %v136
    %907 = vmatpush.msra.mxu0 %v132
    %908 = vmatpush.msra.mxu0 %v128
    %909 = vmatpush.msra.mxu0 %v124
    %910 = vmatpush.msra.mxu0 %v120
    %911 = vmatpush.msra.mxu0 %v116
    %912 = vmatpush.msra.mxu0 %v112
    %913 = vmatpush.msra.mxu0 %v108
    %914 = vmatmul.f32.gmra.mxu0 %v825
    %v915 = vpop.f32.mrf.mxu0
    %v916 = vadd.f32 0.0, %v915
    %917 = vdwg.mxu0
    %v918 = vadd.f32 %v834, %v856
    %v919 = vadd.f32 %v835, %v876
    %v920 = vadd.f32 %v836, %v896
    %v921 = vadd.f32 %v837, %v916
    %v922 = vxor.u32 %v918, 2147483648
    %v923 = vmul.f32 %v922, 1.442695
    %v924 = vpow.pop %v923
    %v925 = vadd.f32 %v924, 1.0
    %v926 = vrcp.pop %v925
    %v927 = vmul.f32 %v925, %v926
    %v928 = vsub.f32 1.0, %v927
    %v929 = vmul.f32 %v926, %v928
    %v930 = vadd.f32 %v926, %v929
    %vm931 = vweird.f32 %v925
    %vm932 = vweird.f32 %v926
    %vm933 = vmor %vm931, %vm932
    %v934 = vsel %vm933, %v926, %v930
    %v935 = vand.u32 2147483647, %v925
    %vm936 = vcmp.eq.f32.partialorder %v935, 8.507059e+37
    %v937 = vand.u32 %v925, 2147483648
    %v938 = vor.u32 1.1754944e-38, %v937
    %v939 = vsel %vm936, %v938, %v934
    %v940 = vmul.f32 1.0, %v939
    %v941 = vxor.u32 %v919, 2147483648
    %v942 = vmul.f32 %v941, 1.442695
    %v943 = vpow.pop %v942
    %v944 = vadd.f32 %v943, 1.0
    %v945 = vrcp.pop %v944
    %v946 = vmul.f32 %v944, %v945
    %v947 = vsub.f32 1.0, %v946
    %v948 = vmul.f32 %v945, %v947
    %v949 = vadd.f32 %v945, %v948
    %vm950 = vweird.f32 %v944
    %vm951 = vweird.f32 %v945
    %vm952 = vmor %vm950, %vm951
    %v953 = vsel %vm952, %v945, %v949
    %v954 = vand.u32 2147483647, %v944
    %vm955 = vcmp.eq.f32.partialorder %v954, 8.507059e+37
    %v956 = vand.u32 %v944, 2147483648
    %v957 = vor.u32 1.1754944e-38, %v956
    %v958 = vsel %vm955, %v957, %v953
    %v959 = vmul.f32 1.0, %v958
    %v960 = vtanh.pop %v920
    %v961 = vxor.u32 %v921, 2147483648
    %v962 = vmul.f32 %v961, 1.442695
    %v963 = vpow.pop %v962
    %v964 = vadd.f32 %v963, 1.0
    %v965 = vrcp.pop %v964
    %v966 = vmul.f32 %v964, %v965
    %v967 = vsub.f32 1.0, %v966
    %v968 = vmul.f32 %v965, %v967
    %v969 = vadd.f32 %v965, %v968
    %vm970 = vweird.f32 %v964
    %vm971 = vweird.f32 %v965
    %vm972 = vmor %vm970, %vm971
    %v973 = vsel %vm972, %v965, %v969
    %v974 = vand.u32 2147483647, %v964
    %vm975 = vcmp.eq.f32.partialorder %v974, 8.507059e+37
    %v976 = vand.u32 %v964, 2147483648
    %v977 = vor.u32 1.1754944e-38, %v976
    %v978 = vsel %vm975, %v977, %v973
    %v979 = vmul.f32 1.0, %v978
    %v980 = vmul.f32 %v959, %v823
    %v981 = vmul.f32 %v940, %v960
    %v982 = vadd.f32 %v980, %v981
    %v983 = vtanh.pop %v982
    %v984 = vmul.f32 %v979, %v983
    %985 = vset.pattern.permute.xlu0 5
    %986 = vperm.xlu0 %985, %v102
    %v987 = vpop.permute.xlu0 %986
    %v989 = vmul.f32 %v987, %v177
    %v990 = vmul.f32 %v987, %v178
    %v991 = vmul.f32 %v987, %v179
    %v992 = vmul.f32 %v987, %v180
    %v993 = vadd.f32 %v989, %v190
    %v994 = vadd.f32 %v990, %v191
    %v995 = vadd.f32 %v991, %v192
    %v996 = vadd.f32 %v992, %v193
    %997 = vmatpush.msra.mxu0 %v165
    %998 = vmatpush.msra.mxu0 %v161
    %999 = vmatpush.msra.mxu0 %v157
    %1000 = vmatpush.msra.mxu0 %v153
    %1001 = vmatpush.msra.mxu0 %v149
    %1002 = vmatpush.msra.mxu0 %v145
    %1003 = vmatpush.msra.mxu0 %v141
    %1004 = vmatpush.msra.mxu0 %v137
    %1005 = vmatpush.msra.mxu0 %v133
    %1006 = vmatpush.msra.mxu0 %v129
    %1007 = vmatpush.msra.mxu0 %v125
    %1008 = vmatpush.msra.mxu0 %v121
    %1009 = vmatpush.msra.mxu0 %v117
    %1010 = vmatpush.msra.mxu0 %v113
    %1011 = vmatpush.msra.mxu0 %v109
    %1012 = vmatpush.msra.mxu0 %v105
    %1013 = vmatmul.f32.gmra.mxu0 %v984
    %v1014 = vpop.f32.mrf.mxu0
    %v1015 = vadd.f32 0.0, %v1014
    %1016 = vdwg.mxu0
    %1017 = vmatpush.msra.mxu0 %v166
    %1018 = vmatpush.msra.mxu0 %v162
    %1019 = vmatpush.msra.mxu0 %v158
    %1020 = vmatpush.msra.mxu0 %v154
    %1021 = vmatpush.msra.mxu0 %v150
    %1022 = vmatpush.msra.mxu0 %v146
    %1023 = vmatpush.msra.mxu0 %v142
    %1024 = vmatpush.msra.mxu0 %v138
    %1025 = vmatpush.msra.mxu0 %v134
    %1026 = vmatpush.msra.mxu0 %v130
    %1027 = vmatpush.msra.mxu0 %v126
    %1028 = vmatpush.msra.mxu0 %v122
    %1029 = vmatpush.msra.mxu0 %v118
    %1030 = vmatpush.msra.mxu0 %v114
    %1031 = vmatpush.msra.mxu0 %v110
    %1032 = vmatpush.msra.mxu0 %v106
    %1033 = vmatmul.f32.gmra.mxu0 %v984
    %v1034 = vpop.f32.mrf.mxu0
    %v1035 = vadd.f32 0.0, %v1034
    %1036 = vdwg.mxu0
    %1037 = vmatpush.msra.mxu0 %v167
    %1038 = vmatpush.msra.mxu0 %v163
    %1039 = vmatpush.msra.mxu0 %v159
    %1040 = vmatpush.msra.mxu0 %v155
    %1041 = vmatpush.msra.mxu0 %v151
    %1042 = vmatpush.msra.mxu0 %v147
    %1043 = vmatpush.msra.mxu0 %v143
    %1044 = vmatpush.msra.mxu0 %v139
    %1045 = vmatpush.msra.mxu0 %v135
    %1046 = vmatpush.msra.mxu0 %v131
    %1047 = vmatpush.msra.mxu0 %v127
    %1048 = vmatpush.msra.mxu0 %v123
    %1049 = vmatpush.msra.mxu0 %v119
    %1050 = vmatpush.msra.mxu0 %v115
    %1051 = vmatpush.msra.mxu0 %v111
    %1052 = vmatpush.msra.mxu0 %v107
    %1053 = vmatmul.f32.gmra.mxu0 %v984
    %v1054 = vpop.f32.mrf.mxu0
    %v1055 = vadd.f32 0.0, %v1054
    %1056 = vdwg.mxu0
    %1057 = vmatpush.msra.mxu0 %v168
    %1058 = vmatpush.msra.mxu0 %v164
    %1059 = vmatpush.msra.mxu0 %v160
    %1060 = vmatpush.msra.mxu0 %v156
    %1061 = vmatpush.msra.mxu0 %v152
    %1062 = vmatpush.msra.mxu0 %v148
    %1063 = vmatpush.msra.mxu0 %v144
    %1064 = vmatpush.msra.mxu0 %v140
    %1065 = vmatpush.msra.mxu0 %v136
    %1066 = vmatpush.msra.mxu0 %v132
    %1067 = vmatpush.msra.mxu0 %v128
    %1068 = vmatpush.msra.mxu0 %v124
    %1069 = vmatpush.msra.mxu0 %v120
    %1070 = vmatpush.msra.mxu0 %v116
    %1071 = vmatpush.msra.mxu0 %v112
    %1072 = vmatpush.msra.mxu0 %v108
    %1073 = vmatmul.f32.gmra.mxu0 %v984
    %v1074 = vpop.f32.mrf.mxu0
    %v1075 = vadd.f32 0.0, %v1074
    %1076 = vdwg.mxu0
    %v1077 = vadd.f32 %v993, %v1015
    %v1078 = vadd.f32 %v994, %v1035
    %v1079 = vadd.f32 %v995, %v1055
    %v1080 = vadd.f32 %v996, %v1075
    %v1081 = vxor.u32 %v1077, 2147483648
    %v1082 = vmul.f32 %v1081, 1.442695
    %v1083 = vpow.pop %v1082
    %v1084 = vadd.f32 %v1083, 1.0
    %v1085 = vrcp.pop %v1084
    %v1086 = vmul.f32 %v1084, %v1085
    %v1087 = vsub.f32 1.0, %v1086
    %v1088 = vmul.f32 %v1085, %v1087
    %v1089 = vadd.f32 %v1085, %v1088
    %vm1090 = vweird.f32 %v1084
    %vm1091 = vweird.f32 %v1085
    %vm1092 = vmor %vm1090, %vm1091
    %v1093 = vsel %vm1092, %v1085, %v1089
    %v1094 = vand.u32 2147483647, %v1084
    %vm1095 = vcmp.eq.f32.partialorder %v1094, 8.507059e+37
    %v1096 = vand.u32 %v1084, 2147483648
    %v1097 = vor.u32 1.1754944e-38, %v1096
    %v1098 = vsel %vm1095, %v1097, %v1093
    %v1099 = vmul.f32 1.0, %v1098
    %v1100 = vxor.u32 %v1078, 2147483648
    %v1101 = vmul.f32 %v1100, 1.442695
    %v1102 = vpow.pop %v1101
    %v1103 = vadd.f32 %v1102, 1.0
    %v1104 = vrcp.pop %v1103
    %v1105 = vmul.f32 %v1103, %v1104
    %v1106 = vsub.f32 1.0, %v1105
    %v1107 = vmul.f32 %v1104, %v1106
    %v1108 = vadd.f32 %v1104, %v1107
    %vm1109 = vweird.f32 %v1103
    %vm1110 = vweird.f32 %v1104
    %vm1111 = vmor %vm1109, %vm1110
    %v1112 = vsel %vm1111, %v1104, %v1108
    %v1113 = vand.u32 2147483647, %v1103
    %vm1114 = vcmp.eq.f32.partialorder %v1113, 8.507059e+37
    %v1115 = vand.u32 %v1103, 2147483648
    %v1116 = vor.u32 1.1754944e-38, %v1115
    %v1117 = vsel %vm1114, %v1116, %v1112
    %v1118 = vmul.f32 1.0, %v1117
    %v1119 = vtanh.pop %v1079
    %v1120 = vxor.u32 %v1080, 2147483648
    %v1121 = vmul.f32 %v1120, 1.442695
    %v1122 = vpow.pop %v1121
    %v1123 = vadd.f32 %v1122, 1.0
    %v1124 = vrcp.pop %v1123
    %v1125 = vmul.f32 %v1123, %v1124
    %v1126 = vsub.f32 1.0, %v1125
    %v1127 = vmul.f32 %v1124, %v1126
    %v1128 = vadd.f32 %v1124, %v1127
    %vm1129 = vweird.f32 %v1123
    %vm1130 = vweird.f32 %v1124
    %vm1131 = vmor %vm1129, %vm1130
    %v1132 = vsel %vm1131, %v1124, %v1128
    %v1133 = vand.u32 2147483647, %v1123
    %vm1134 = vcmp.eq.f32.partialorder %v1133, 8.507059e+37
    %v1135 = vand.u32 %v1123, 2147483648
    %v1136 = vor.u32 1.1754944e-38, %v1135
    %v1137 = vsel %vm1134, %v1136, %v1132
    %v1138 = vmul.f32 1.0, %v1137
    %v1139 = vmul.f32 %v1118, %v982
    %v1140 = vmul.f32 %v1099, %v1119
    %v1141 = vadd.f32 %v1139, %v1140
    %v1142 = vtanh.pop %v1141
    %v1143 = vmul.f32 %v1138, %v1142
    %1144 = vset.pattern.permute.xlu0 6
    %1145 = vperm.xlu0 %1144, %v102
    %v1146 = vpop.permute.xlu0 %1145
    %v1148 = vmul.f32 %v1146, %v177
    %v1149 = vmul.f32 %v1146, %v178
    %v1150 = vmul.f32 %v1146, %v179
    %v1151 = vmul.f32 %v1146, %v180
    %v1152 = vadd.f32 %v1148, %v190
    %v1153 = vadd.f32 %v1149, %v191
    %v1154 = vadd.f32 %v1150, %v192
    %v1155 = vadd.f32 %v1151, %v193
    %1156 = vmatpush.msra.mxu0 %v165
    %1157 = vmatpush.msra.mxu0 %v161
    %1158 = vmatpush.msra.mxu0 %v157
    %1159 = vmatpush.msra.mxu0 %v153
    %1160 = vmatpush.msra.mxu0 %v149
    %1161 = vmatpush.msra.mxu0 %v145
    %1162 = vmatpush.msra.mxu0 %v141
    %1163 = vmatpush.msra.mxu0 %v137
    %1164 = vmatpush.msra.mxu0 %v133
    %1165 = vmatpush.msra.mxu0 %v129
    %1166 = vmatpush.msra.mxu0 %v125
    %1167 = vmatpush.msra.mxu0 %v121
    %1168 = vmatpush.msra.mxu0 %v117
    %1169 = vmatpush.msra.mxu0 %v113
    %1170 = vmatpush.msra.mxu0 %v109
    %1171 = vmatpush.msra.mxu0 %v105
    %1172 = vmatmul.f32.gmra.mxu0 %v1143
    %v1173 = vpop.f32.mrf.mxu0
    %v1174 = vadd.f32 0.0, %v1173
    %1175 = vdwg.mxu0
    %1176 = vmatpush.msra.mxu0 %v166
    %1177 = vmatpush.msra.mxu0 %v162
    %1178 = vmatpush.msra.mxu0 %v158
    %1179 = vmatpush.msra.mxu0 %v154
    %1180 = vmatpush.msra.mxu0 %v150
    %1181 = vmatpush.msra.mxu0 %v146
    %1182 = vmatpush.msra.mxu0 %v142
    %1183 = vmatpush.msra.mxu0 %v138
    %1184 = vmatpush.msra.mxu0 %v134
    %1185 = vmatpush.msra.mxu0 %v130
    %1186 = vmatpush.msra.mxu0 %v126
    %1187 = vmatpush.msra.mxu0 %v122
    %1188 = vmatpush.msra.mxu0 %v118
    %1189 = vmatpush.msra.mxu0 %v114
    %1190 = vmatpush.msra.mxu0 %v110
    %1191 = vmatpush.msra.mxu0 %v106
    %1192 = vmatmul.f32.gmra.mxu0 %v1143
    %v1193 = vpop.f32.mrf.mxu0
    %v1194 = vadd.f32 0.0, %v1193
    %1195 = vdwg.mxu0
    %1196 = vmatpush.msra.mxu0 %v167
    %1197 = vmatpush.msra.mxu0 %v163
    %1198 = vmatpush.msra.mxu0 %v159
    %1199 = vmatpush.msra.mxu0 %v155
    %1200 = vmatpush.msra.mxu0 %v151
    %1201 = vmatpush.msra.mxu0 %v147
    %1202 = vmatpush.msra.mxu0 %v143
    %1203 = vmatpush.msra.mxu0 %v139
    %1204 = vmatpush.msra.mxu0 %v135
    %1205 = vmatpush.msra.mxu0 %v131
    %1206 = vmatpush.msra.mxu0 %v127
    %1207 = vmatpush.msra.mxu0 %v123
    %1208 = vmatpush.msra.mxu0 %v119
    %1209 = vmatpush.msra.mxu0 %v115
    %1210 = vmatpush.msra.mxu0 %v111
    %1211 = vmatpush.msra.mxu0 %v107
    %1212 = vmatmul.f32.gmra.mxu0 %v1143
    %v1213 = vpop.f32.mrf.mxu0
    %v1214 = vadd.f32 0.0, %v1213
    %1215 = vdwg.mxu0
    %1216 = vmatpush.msra.mxu0 %v168
    %1217 = vmatpush.msra.mxu0 %v164
    %1218 = vmatpush.msra.mxu0 %v160
    %1219 = vmatpush.msra.mxu0 %v156
    %1220 = vmatpush.msra.mxu0 %v152
    %1221 = vmatpush.msra.mxu0 %v148
    %1222 = vmatpush.msra.mxu0 %v144
    %1223 = vmatpush.msra.mxu0 %v140
    %1224 = vmatpush.msra.mxu0 %v136
    %1225 = vmatpush.msra.mxu0 %v132
    %1226 = vmatpush.msra.mxu0 %v128
    %1227 = vmatpush.msra.mxu0 %v124
    %1228 = vmatpush.msra.mxu0 %v120
    %1229 = vmatpush.msra.mxu0 %v116
    %1230 = vmatpush.msra.mxu0 %v112
    %1231 = vmatpush.msra.mxu0 %v108
    %1232 = vmatmul.f32.gmra.mxu0 %v1143
    %v1233 = vpop.f32.mrf.mxu0
    %v1234 = vadd.f32 0.0, %v1233
    %1235 = vdwg.mxu0
    %v1236 = vadd.f32 %v1152, %v1174
    %v1237 = vadd.f32 %v1153, %v1194
    %v1238 = vadd.f32 %v1154, %v1214
    %v1239 = vadd.f32 %v1155, %v1234
    %v1240 = vxor.u32 %v1236, 2147483648
    %v1241 = vmul.f32 %v1240, 1.442695
    %v1242 = vpow.pop %v1241
    %v1243 = vadd.f32 %v1242, 1.0
    %v1244 = vrcp.pop %v1243
    %v1245 = vmul.f32 %v1243, %v1244
    %v1246 = vsub.f32 1.0, %v1245
    %v1247 = vmul.f32 %v1244, %v1246
    %v1248 = vadd.f32 %v1244, %v1247
    %vm1249 = vweird.f32 %v1243
    %vm1250 = vweird.f32 %v1244
    %vm1251 = vmor %vm1249, %vm1250
    %v1252 = vsel %vm1251, %v1244, %v1248
    %v1253 = vand.u32 2147483647, %v1243
    %vm1254 = vcmp.eq.f32.partialorder %v1253, 8.507059e+37
    %v1255 = vand.u32 %v1243, 2147483648
    %v1256 = vor.u32 1.1754944e-38, %v1255
    %v1257 = vsel %vm1254, %v1256, %v1252
    %v1258 = vmul.f32 1.0, %v1257
    %v1259 = vxor.u32 %v1237, 2147483648
    %v1260 = vmul.f32 %v1259, 1.442695
    %v1261 = vpow.pop %v1260
    %v1262 = vadd.f32 %v1261, 1.0
    %v1263 = vrcp.pop %v1262
    %v1264 = vmul.f32 %v1262, %v1263
    %v1265 = vsub.f32 1.0, %v1264
    %v1266 = vmul.f32 %v1263, %v1265
    %v1267 = vadd.f32 %v1263, %v1266
    %vm1268 = vweird.f32 %v1262
    %vm1269 = vweird.f32 %v1263
    %vm1270 = vmor %vm1268, %vm1269
    %v1271 = vsel %vm1270, %v1263, %v1267
    %v1272 = vand.u32 2147483647, %v1262
    %vm1273 = vcmp.eq.f32.partialorder %v1272, 8.507059e+37
    %v1274 = vand.u32 %v1262, 2147483648
    %v1275 = vor.u32 1.1754944e-38, %v1274
    %v1276 = vsel %vm1273, %v1275, %v1271
    %v1277 = vmul.f32 1.0, %v1276
    %v1278 = vtanh.pop %v1238
    %v1279 = vxor.u32 %v1239, 2147483648
    %v1280 = vmul.f32 %v1279, 1.442695
    %v1281 = vpow.pop %v1280
    %v1282 = vadd.f32 %v1281, 1.0
    %v1283 = vrcp.pop %v1282
    %v1284 = vmul.f32 %v1282, %v1283
    %v1285 = vsub.f32 1.0, %v1284
    %v1286 = vmul.f32 %v1283, %v1285
    %v1287 = vadd.f32 %v1283, %v1286
    %vm1288 = vweird.f32 %v1282
    %vm1289 = vweird.f32 %v1283
    %vm1290 = vmor %vm1288, %vm1289
    %v1291 = vsel %vm1290, %v1283, %v1287
    %v1292 = vand.u32 2147483647, %v1282
    %vm1293 = vcmp.eq.f32.partialorder %v1292, 8.507059e+37
    %v1294 = vand.u32 %v1282, 2147483648
    %v1295 = vor.u32 1.1754944e-38, %v1294
    %v1296 = vsel %vm1293, %v1295, %v1291
    %v1297 = vmul.f32 1.0, %v1296
    %v1298 = vmul.f32 %v1277, %v1141
    %v1299 = vmul.f32 %v1258, %v1278
    %v1300 = vadd.f32 %v1298, %v1299
    %v1301 = vtanh.pop %v1300
    %v1302 = vmul.f32 %v1297, %v1301
    %1303 = vset.pattern.permute.xlu0 7
    %1304 = vperm.xlu0 %1303, %v102
    %v1305 = vpop.permute.xlu0 %1304
    %v1307 = vmul.f32 %v1305, %v177
    %v1308 = vmul.f32 %v1305, %v178
    %v1309 = vmul.f32 %v1305, %v179
    %v1310 = vmul.f32 %v1305, %v180
    %v1311 = vadd.f32 %v1307, %v190
    %v1312 = vadd.f32 %v1308, %v191
    %v1313 = vadd.f32 %v1309, %v192
    %v1314 = vadd.f32 %v1310, %v193
    %1315 = vmatpush.msra.mxu0 %v165
    %1316 = vmatpush.msra.mxu0 %v161
    %1317 = vmatpush.msra.mxu0 %v157
    %1318 = vmatpush.msra.mxu0 %v153
    %1319 = vmatpush.msra.mxu0 %v149
    %1320 = vmatpush.msra.mxu0 %v145
    %1321 = vmatpush.msra.mxu0 %v141
    %1322 = vmatpush.msra.mxu0 %v137
    %1323 = vmatpush.msra.mxu0 %v133
    %1324 = vmatpush.msra.mxu0 %v129
    %1325 = vmatpush.msra.mxu0 %v125
    %1326 = vmatpush.msra.mxu0 %v121
    %1327 = vmatpush.msra.mxu0 %v117
    %1328 = vmatpush.msra.mxu0 %v113
    %1329 = vmatpush.msra.mxu0 %v109
    %1330 = vmatpush.msra.mxu0 %v105
    %1331 = vmatmul.f32.gmra.mxu0 %v1302
    %v1332 = vpop.f32.mrf.mxu0
    %v1333 = vadd.f32 0.0, %v1332
    %1334 = vdwg.mxu0
    %1335 = vmatpush.msra.mxu0 %v166
    %1336 = vmatpush.msra.mxu0 %v162
    %1337 = vmatpush.msra.mxu0 %v158
    %1338 = vmatpush.msra.mxu0 %v154
    %1339 = vmatpush.msra.mxu0 %v150
    %1340 = vmatpush.msra.mxu0 %v146
    %1341 = vmatpush.msra.mxu0 %v142
    %1342 = vmatpush.msra.mxu0 %v138
    %1343 = vmatpush.msra.mxu0 %v134
    %1344 = vmatpush.msra.mxu0 %v130
    %1345 = vmatpush.msra.mxu0 %v126
    %1346 = vmatpush.msra.mxu0 %v122
    %1347 = vmatpush.msra.mxu0 %v118
    %1348 = vmatpush.msra.mxu0 %v114
    %1349 = vmatpush.msra.mxu0 %v110
    %1350 = vmatpush.msra.mxu0 %v106
    %1351 = vmatmul.f32.gmra.mxu0 %v1302
    %v1352 = vpop.f32.mrf.mxu0
    %v1353 = vadd.f32 0.0, %v1352
    %1354 = vdwg.mxu0
    %1355 = vmatpush.msra.mxu0 %v167
    %1356 = vmatpush.msra.mxu0 %v163
    %1357 = vmatpush.msra.mxu0 %v159
    %1358 = vmatpush.msra.mxu0 %v155
    %1359 = vmatpush.msra.mxu0 %v151
    %1360 = vmatpush.msra.mxu0 %v147
    %1361 = vmatpush.msra.mxu0 %v143
    %1362 = vmatpush.msra.mxu0 %v139
    %1363 = vmatpush.msra.mxu0 %v135
    %1364 = vmatpush.msra.mxu0 %v131
    %1365 = vmatpush.msra.mxu0 %v127
    %1366 = vmatpush.msra.mxu0 %v123
    %1367 = vmatpush.msra.mxu0 %v119
    %1368 = vmatpush.msra.mxu0 %v115
    %1369 = vmatpush.msra.mxu0 %v111
    %1370 = vmatpush.msra.mxu0 %v107
    %1371 = vmatmul.f32.gmra.mxu0 %v1302
    %v1372 = vpop.f32.mrf.mxu0
    %v1373 = vadd.f32 0.0, %v1372
    %1374 = vdwg.mxu0
    %1375 = vmatpush.msra.mxu0 %v168
    %1376 = vmatpush.msra.mxu0 %v164
    %1377 = vmatpush.msra.mxu0 %v160
    %1378 = vmatpush.msra.mxu0 %v156
    %1379 = vmatpush.msra.mxu0 %v152
    %1380 = vmatpush.msra.mxu0 %v148
    %1381 = vmatpush.msra.mxu0 %v144
    %1382 = vmatpush.msra.mxu0 %v140
    %1383 = vmatpush.msra.mxu0 %v136
    %1384 = vmatpush.msra.mxu0 %v132
    %1385 = vmatpush.msra.mxu0 %v128
    %1386 = vmatpush.msra.mxu0 %v124
    %1387 = vmatpush.msra.mxu0 %v120
    %1388 = vmatpush.msra.mxu0 %v116
    %1389 = vmatpush.msra.mxu0 %v112
    %1390 = vmatpush.msra.mxu0 %v108
    %1391 = vmatmul.f32.gmra.mxu0 %v1302
    %v1392 = vpop.f32.mrf.mxu0
    %v1393 = vadd.f32 0.0, %v1392
    %1394 = vdwg.mxu0
    %v1395 = vadd.f32 %v1311, %v1333
    %v1396 = vadd.f32 %v1312, %v1353
    %v1397 = vadd.f32 %v1313, %v1373
    %v1398 = vadd.f32 %v1314, %v1393
    %v1399 = vxor.u32 %v1395, 2147483648
    %v1400 = vmul.f32 %v1399, 1.442695
    %v1401 = vpow.pop %v1400
    %v1402 = vadd.f32 %v1401, 1.0
    %v1403 = vrcp.pop %v1402
    %v1404 = vmul.f32 %v1402, %v1403
    %v1405 = vsub.f32 1.0, %v1404
    %v1406 = vmul.f32 %v1403, %v1405
    %v1407 = vadd.f32 %v1403, %v1406
    %vm1408 = vweird.f32 %v1402
    %vm1409 = vweird.f32 %v1403
    %vm1410 = vmor %vm1408, %vm1409
    %v1411 = vsel %vm1410, %v1403, %v1407
    %v1412 = vand.u32 2147483647, %v1402
    %vm1413 = vcmp.eq.f32.partialorder %v1412, 8.507059e+37
    %v1414 = vand.u32 %v1402, 2147483648
    %v1415 = vor.u32 1.1754944e-38, %v1414
    %v1416 = vsel %vm1413, %v1415, %v1411
    %v1417 = vmul.f32 1.0, %v1416
    %v1418 = vxor.u32 %v1396, 2147483648
    %v1419 = vmul.f32 %v1418, 1.442695
    %v1420 = vpow.pop %v1419
    %v1421 = vadd.f32 %v1420, 1.0
    %v1422 = vrcp.pop %v1421
    %v1423 = vmul.f32 %v1421, %v1422
    %v1424 = vsub.f32 1.0, %v1423
    %v1425 = vmul.f32 %v1422, %v1424
    %v1426 = vadd.f32 %v1422, %v1425
    %vm1427 = vweird.f32 %v1421
    %vm1428 = vweird.f32 %v1422
    %vm1429 = vmor %vm1427, %vm1428
    %v1430 = vsel %vm1429, %v1422, %v1426
    %v1431 = vand.u32 2147483647, %v1421
    %vm1432 = vcmp.eq.f32.partialorder %v1431, 8.507059e+37
    %v1433 = vand.u32 %v1421, 2147483648
    %v1434 = vor.u32 1.1754944e-38, %v1433
    %v1435 = vsel %vm1432, %v1434, %v1430
    %v1436 = vmul.f32 1.0, %v1435
    %v1437 = vtanh.pop %v1397
    %v1438 = vxor.u32 %v1398, 2147483648
    %v1439 = vmul.f32 %v1438, 1.442695
    %v1440 = vpow.pop %v1439
    %v1441 = vadd.f32 %v1440, 1.0
    %v1442 = vrcp.pop %v1441
    %v1443 = vmul.f32 %v1441, %v1442
    %v1444 = vsub.f32 1.0, %v1443
    %v1445 = vmul.f32 %v1442, %v1444
    %v1446 = vadd.f32 %v1442, %v1445
    %vm1447 = vweird.f32 %v1441
    %vm1448 = vweird.f32 %v1442
    %vm1449 = vmor %vm1447, %vm1448
    %v1450 = vsel %vm1449, %v1442, %v1446
    %v1451 = vand.u32 2147483647, %v1441
    %vm1452 = vcmp.eq.f32.partialorder %v1451, 8.507059e+37
    %v1453 = vand.u32 %v1441, 2147483648
    %v1454 = vor.u32 1.1754944e-38, %v1453
    %v1455 = vsel %vm1452, %v1454, %v1450
    %v1456 = vmul.f32 1.0, %v1455
    %v1457 = vmul.f32 %v1436, %v1300
    %v1458 = vmul.f32 %v1417, %v1437
    %v1459 = vadd.f32 %v1457, %v1458
    %v1460 = vtanh.pop %v1459
    %v1461 = vmul.f32 %v1456, %v1460
    %1462 = vst [vmem:[#allocation2] sm:$0xff] %v1461
    %1463 = vst [vmem:[#allocation3] sm:$0xff] %v1459
    // Predicated region
    $region50: #{tpu_custom_call.1} parent=1 // pred_check
      %p1464 = pneg %p96
    $region51: #{tpu_custom_call.1} parent=1 // pred_check_branch
      %1466 = sbr.rel (%p1464) target = $region53
    $region52: #{tpu_custom_call.1} parent=1 // pred_region
      %v1467 = vld [vmem:[#allocation12] sm:$0xff]
      %v1468 = vld [vmem:[#allocation12 + $0x8] sm:$0xff]
      %v1469 = vld [vmem:[#allocation12 + $0x10] sm:$0xff]
      %v1470 = vld [vmem:[#allocation12 + $0x18] sm:$0xff]
      %v1471 = vld [vmem:[#allocation12 + $0x20] sm:$0xff]
      %v1472 = vld [vmem:[#allocation12 + $0x28] sm:$0xff]
      %v1473 = vld [vmem:[#allocation12 + $0x30] sm:$0xff]
      %v1474 = vld [vmem:[#allocation12 + $0x38] sm:$0xff]
      %v1475 = vld [vmem:[#allocation12 + $0x40] sm:$0xff]
      %v1476 = vld [vmem:[#allocation12 + $0x48] sm:$0xff]
      %v1477 = vld [vmem:[#allocation12 + $0x50] sm:$0xff]
      %v1478 = vld [vmem:[#allocation12 + $0x58] sm:$0xff]
      %v1479 = vld [vmem:[#allocation12 + $0x60] sm:$0xff]
      %v1480 = vld [vmem:[#allocation12 + $0x68] sm:$0xff]
      %v1481 = vld [vmem:[#allocation12 + $0x70] sm:$0xff]
      %v1482 = vld [vmem:[#allocation12 + $0x78] sm:$0xff]
      %v1483 = vld [vmem:[%s5] sm:$0x1]
      %v1485 = vperm.slane %v1483, 0
      %1487 = vmatpush.msra.mxu0 %v1482
      %1488 = vmatpush.msra.mxu0 %v1481
      %1489 = vmatpush.msra.mxu0 %v1480
      %1490 = vmatpush.msra.mxu0 %v1479
      %1491 = vmatpush.msra.mxu0 %v1478
      %1492 = vmatpush.msra.mxu0 %v1477
      %1493 = vmatpush.msra.mxu0 %v1476
      %1494 = vmatpush.msra.mxu0 %v1475
      %1495 = vmatpush.msra.mxu0 %v1474
      %1496 = vmatpush.msra.mxu0 %v1473
      %1497 = vmatpush.msra.mxu0 %v1472
      %1498 = vmatpush.msra.mxu0 %v1471
      %1499 = vmatpush.msra.mxu0 %v1470
      %1500 = vmatpush.msra.mxu0 %v1469
      %1501 = vmatpush.msra.mxu0 %v1468
      %1502 = vmatpush.msra.mxu0 %v1467
      %1503 = vmatmul.f32.gmra.mxu0 %v1461
      %v1504 = vpop.f32.mrf.mxu0
      %v1505 = vadd.f32 %v1485, %v1504
      %1506 = vdwg.mxu0
      %1507 = vst [vmem:[#allocation13] sm:$0xff] %v1505
    $region53: #{tpu_custom_call.1} parent=1 // pred_fallthru
      _
    // Predicated region
    $region54: #{tpu_custom_call.1} parent=1 // pred_check
      _
    $region55: #{tpu_custom_call.1} parent=1 // pred_check_branch
      %1509 = sbr.rel (0) target = $region57
    $region56: #{tpu_custom_call.1} parent=1 // pred_region
      %1511 = vsyncadd [#allocation6], 0
      %s1513 = sshll.u32 [#allocation13], 4
      %s1514 = int_to_ptr.vmem [resolvable:$true] %s1513
      %s1515 = sshll.u32 %s6, 4
      %s1516 = int_to_ptr.hbm [resolvable:$true] %s1515
      %1518 = dma.vmem_to_hbm [thread:$0]  %s1514, 128, %s1516, [#allocation6]
    $region57: #{tpu_custom_call.1} parent=1 // pred_fallthru
      _
    // Predicated region
    $region58: #{tpu_custom_call.1} parent=1 // pred_check
      _
    $region59: #{tpu_custom_call.1} parent=1 // pred_check_branch
      %1520 = sbr.rel (0) target = $region61
    $region60: #{tpu_custom_call.1} parent=1 // pred_region
      %1522 = dma.done [#allocation6], 128
    $region61: #{tpu_custom_call.1} parent=1 // pred_fallthru
      _
    %1523 = vsyncpa [#allocation5], 1
    %1524 = vsyncpa [#allocation8], 1
    %1525 = vsyncpa [#allocation11], 1
    %1526 = vsyncpa [#allocation6], 1

</llo_original>
